<compile_context>
chip_gen: v7x
topology: tpu7x:2x2x1
jax: 0.10.0
libtpu: 0.0.40
codegen_flags: <defaults>
</compile_context>

<pallas_src>
import math
import jax
import jax.numpy as jnp
from jax import lax
from jax.experimental import pallas as pl
from jax.experimental.pallas import tpu as pltpu

LANE = 128
SUBLANE = 8


# ----------------------------- helpers --------------------------------------

def _round_up(n, m):
    return ((n + m - 1) // m) * m


def _pad2(a, rows, cols):
    out = jnp.zeros((rows, cols), a.dtype)
    return out.at[: a.shape[0], : a.shape[1]].set(a)


def _full_spec(shape):
    # whole-array block resident in VMEM (all shapes here are small & padded)
    return pl.BlockSpec(shape, lambda: (0,) * len(shape))


# ----------------------------- fused kernel ---------------------------------

def _make_fused_kernel(first_has_self, last_has_self, num_mid,
                       h_pad, oc_pad, out_dim, compute_dtype=jnp.bfloat16):
    cdt = compute_dtype

    def kernel(x_ref, adj_ref, pool_ref, invc_ref, w0_ref, b0_ref, *rest):
        rest = list(rest)
        i = 0
        if num_mid:
            w_mid_ref, b_mid_ref = rest[0], rest[1]
            i = 2
        wL_ref, bL_ref = rest[i], rest[i + 1]
        fcw_ref, fcb_ref = rest[i + 2], rest[i + 3]
        out_ref = rest[i + 4]

        adj = adj_ref[...]          # bf16 (N_pad, N_pad)
        x = x_ref[...]              # f32  (N_pad, F_pad)

        def conv(x, w, b, cout_p, has_self):
            # single packed matmul: [msg | x_self] = x @ [W_msg | W_self] + [b_msg | b_self]
            y = jnp.dot(x.astype(cdt), w, preferred_element_type=jnp.float32) + b
            if has_self:
                msg, x_self = y[:, :cout_p], y[:, cout_p:]
            else:                    # in == out -> lin_self is Identity
                msg, x_self = y, x
            agg = jnp.dot(adj, msg.astype(cdt), preferred_element_type=jnp.float32)
            return agg + x_self

        # first layer
        x = conv(x, w0_ref[...], b0_ref[...], h_pad, first_has_self)

        # middle layers: identical (hidden -> hidden), no lin_self; fori_loop
        # over the stacked weights bounds live ranges for deep stacks.
        if num_mid:
            def mid_body(li, x):
                w = w_mid_ref[li]               # bf16 (H_pad, H_pad)
                b = b_mid_ref[li]               # f32  (1, H_pad)
                msg = jnp.dot(x.astype(cdt), w, preferred_element_type=jnp.float32) + b
                agg = jnp.dot(adj, msg.astype(cdt), preferred_element_type=jnp.float32)
                return agg + x                  # Identity self-connection
            x = lax.fori_loop(0, num_mid, mid_body, x)

        # last layer
        x = conv(x, wL_ref[...], bL_ref[...], oc_pad, last_has_self)

        # global_mean_pool: bf16 one-hot matmul, f32 1/count rescale
        pooled = jnp.dot(pool_ref[...], x.astype(cdt), preferred_element_type=jnp.float32)
        pooled = pooled * invc_ref[...]

        # fc1 + log_softmax (epilogue stays f32; tiny matmul)
        logits = jnp.dot(pooled, fcw_ref[...], preferred_element_type=jnp.float32) + fcb_ref[...]
        col = lax.broadcasted_iota(jnp.int32, logits.shape, 1)
        logits = jnp.where(col < out_dim, logits, -jnp.inf)
        m = jnp.max(logits, axis=-1, keepdims=True)
        shifted = logits - m
        lse = jnp.log(jnp.sum(jnp.exp(shifted), axis=-1, keepdims=True))
        out_ref[...] = shifted - lse

    return kernel


# ----------------------------- init (head-mean folding + W packing) ---------

def init_linear(key, in_dim, out_dim):
    # PyTorch nn.Linear default init: U(-1/sqrt(in), 1/sqrt(in))
    k_w, k_b = jax.random.split(key)
    bound = 1.0 / math.sqrt(in_dim)
    w = jax.random.uniform(k_w, (in_dim, out_dim), jnp.float32, -bound, bound)
    b = jax.random.uniform(k_b, (1, out_dim), jnp.float32, -bound, bound)
    return w, b


def init_general_convnet(key, out_dim, input_features, output_channels,
                         layers_num, model_dim, hidden_sf=3, out_sf=1,
                         hidden_heads=4):
    assert layers_num >= 2
    hidden = hidden_sf * model_dim
    out_ch = out_sf * output_channels
    dims = ([(input_features, hidden)]
            + [(hidden, hidden)] * (layers_num - 2)
            + [(hidden, out_ch)])
    keys = jax.random.split(key, 2 * layers_num + 1)

    f_pad = _round_up(input_features, LANE)
    h_pad = _round_up(hidden, LANE)
    oc_pad = _round_up(out_ch, LANE)
    d_pad = _round_up(out_dim, LANE)

    def msg_weight(k, c_in, c_out):
        # full multi-head message weights, then fold the head-mean into them
        w, b = init_linear(k, c_in, hidden_heads * c_out)
        w = w.reshape(c_in, hidden_heads, c_out).mean(axis=1)
        b = b.reshape(1, hidden_heads, c_out).mean(axis=1)
        return w, b

    def edge_layer(li):
        c_in, c_out = dims[li]
        cin_p, cout_p = _round_up(c_in, LANE), _round_up(c_out, LANE)
        w_m, b_m = msg_weight(keys[2 * li], c_in, c_out)
        has_self = (c_in != c_out)
        if has_self:
            w_s, b_s = init_linear(keys[2 * li + 1], c_in, c_out)
            # pack [W_msg | W_self] -> one 2*Cout_pad-wide matmul (fills 2x256 MXU)
            w_p = jnp.zeros((cin_p, 2 * cout_p), jnp.float32)
            w_p = w_p.at[:c_in, :c_out].set(w_m)
            w_p = w_p.at[:c_in, cout_p:cout_p + c_out].set(w_s)
            b_p = jnp.zeros((1, 2 * cout_p), jnp.float32)
            b_p = b_p.at[:, :c_out].set(b_m)
            b_p = b_p.at[:, cout_p:cout_p + c_out].set(b_s)
        else:
            w_p = _pad2(w_m, cin_p, cout_p)
            b_p = _pad2(b_m, 1, cout_p)
        return has_self, w_p.astype(jnp.bfloat16), b_p

    first_has_self, w0, b0 = edge_layer(0)
    last_has_self, wL, bL = edge_layer(layers_num - 1)

    num_mid = layers_num - 2
    mid = None
    if num_mid:
        w_mid, b_mid = [], []
        for li in range(1, layers_num - 1):
            w_m, b_m = msg_weight(keys[2 * li], hidden, hidden)
            w_mid.append(_pad2(w_m, h_pad, h_pad).astype(jnp.bfloat16))
            b_mid.append(_pad2(b_m, 1, h_pad))
        mid = (jnp.stack(w_mid), jnp.stack(b_mid))   # (M,H,H) bf16 / (M,1,H) f32

    fc_w, fc_b = init_linear(keys[-1], out_ch, out_dim)

    return {
        "first": (first_has_self, w0, b0),
        "mid": mid,
        "num_mid": num_mid,
        "last": (last_has_self, wL, bL),
        "fc": (_pad2(fc_w, oc_pad, d_pad), _pad2(fc_b, 1, d_pad)),
        "out_dim": out_dim,
        "f_pad": f_pad, "h_pad": h_pad, "oc_pad": oc_pad, "d_pad": d_pad,
    }


# ----------------------------- graph operands (hoist: build once) -----------

def prepare_graph(edge_index, batch, num_nodes, num_graphs):
    """Build dense adjacency / pooling operands once for a static topology."""
    n_pad = _round_up(num_nodes, LANE)
    g_pad = _round_up(num_graphs, SUBLANE)
    src, dst = edge_index[0], edge_index[1]

    # dense adjacency A[dst, src], scatter-added directly in bf16 (edge counts
    # <= 256 stay exact); padded rows/cols are zero so phantom nodes never
    # contribute to real nodes.
    adj = jnp.zeros((n_pad, n_pad), jnp.bfloat16).at[dst, src].add(1.0)
    # TODO(synk): for large graphs keep adj in HBM (memory_space=pl.ANY) and
    # stream src-column tiles with pltpu.emit_pipeline (double-buffered DMA)
    # instead of whole-array VMEM residency; dense resident A is O(N^2) and
    # caps N_pad around 4096 on v7x's 64 MiB VMEM.

    # global_mean_pool: bf16 one-hot (exact 0/1) + separate f32 1/count rescale
    one_hot = (batch[None, :] == jnp.arange(num_graphs)[:, None])
    pool = jnp.zeros((g_pad, n_pad), jnp.bfloat16)
    pool = pool.at[:num_graphs, :num_nodes].set(one_hot.astype(jnp.bfloat16))
    counts = jnp.maximum(one_hot.sum(axis=1).astype(jnp.float32), 1.0)
    inv_counts = jnp.zeros((g_pad,), jnp.float32).at[:num_graphs].set(1.0 / counts)
    return adj, pool, inv_counts


# ----------------------------- forward (one pallas_call) --------------------

def general_convnet_forward(x, adj, pool, inv_counts, num_graphs, params):
    n = x.shape[0]
    n_pad = adj.shape[0]
    g_pad = pool.shape[0]
    f_pad, h_pad = params["f_pad"], params["h_pad"]
    oc_pad, d_pad = params["oc_pad"], params["d_pad"]
    num_mid = params["num_mid"]
    out_dim = params["out_dim"]

    x_pad = _pad2(x, n_pad, f_pad)
    inv_full = jnp.broadcast_to(inv_counts[:, None], (g_pad, oc_pad)).astype(jnp.float32)

    first_has_self, w0, b0 = params["first"]
    last_has_self, wL, bL = params["last"]
    fc_w, fc_b = params["fc"]

    inputs = [x_pad, adj, pool, inv_full, w0, b0]
    if num_mid:
        inputs += [params["mid"][0], params["mid"][1]]
    inputs += [wL, bL, fc_w, fc_b]

    kernel = _make_fused_kernel(first_has_self, last_has_self, num_mid,
                                h_pad, oc_pad, out_dim)

    # ---- cost estimate (advisory, lets XLA schedule wrapper ops around us) --
    flops = 2 * n_pad * f_pad * w0.shape[1] + 2 * n_pad * n_pad * h_pad          # first layer
    flops += num_mid * (2 * n_pad * h_pad * h_pad + 2 * n_pad * n_pad * h_pad)   # middle layers
    flops += 2 * n_pad * h_pad * wL.shape[1] + 2 * n_pad * n_pad * oc_pad        # last layer
    flops += 2 * g_pad * n_pad * oc_pad + 2 * g_pad * oc_pad * d_pad             # pool + fc
    bytes_accessed = sum(int(a.size) * a.dtype.itemsize for a in inputs) + g_pad * d_pad * 4
    transcendentals = g_pad * d_pad                                              # exp in log_softmax

    # ---- VMEM limit sized from the actual resident set + temporaries --------
    widest = max(2 * h_pad, 2 * oc_pad, f_pad)
    temp_bytes = 4 * n_pad * widest * 4          # x / packed-y / msg / agg f32 temporaries
    resident = sum(int(a.size) * a.dtype.itemsize for a in inputs) + temp_bytes + g_pad * d_pad * 4
    vmem_limit = int(min(max(2 * resident, 32 << 20), 64 << 20))

    # TODO(synk): on v7x (2 TensorCores) split the aggregation over dst-row
    # blocks with a "parallel" grid axis (one pallas_call per layer or a
    # cross-core barrier between layers); the fused gridless kernel uses one TC.
    out = pl.pallas_call(
        kernel,
        out_shape=jax.ShapeDtypeStruct((g_pad, d_pad), jnp.float32),
        in_specs=[_full_spec(a.shape) for a in inputs],
        out_specs=_full_spec((g_pad, d_pad)),
        compiler_params=pltpu.CompilerParams(vmem_limit_bytes=vmem_limit),
        cost_estimate=pl.CostEstimate(flops=int(flops),
                                      transcendentals=int(transcendentals),
                                      bytes_accessed=int(bytes_accessed)),
    )(*inputs)
    return out[:num_graphs, :out_dim]


# ----------------------------- demo ------------------------------------------

if __name__ == "__main__":
    # hyperparameters (small, consistent with the module)
    out_dim = 5
    input_features = 8
    output_channels = 8
    layers_num = 3
    model_dim = 8
    hidden_heads = 4

    num_graphs = 2
    nodes_per_graph = 8
    n_nodes = num_graphs * nodes_per_graph

    key = jax.random.PRNGKey(0)
    k_params, k_x = jax.random.split(key)

    params = init_general_convnet(
        k_params, out_dim, input_features, output_channels,
        layers_num, model_dim, hidden_sf=3, out_sf=1,
        hidden_heads=hidden_heads)

    # node features
    x = jax.random.normal(k_x, (n_nodes, input_features), jnp.float32)

    # deterministic bidirectional ring per graph
    src_list, dst_list = [], []
    for g in range(num_graphs):
        base = g * nodes_per_graph
        for i in range(nodes_per_graph):
            a = base + i
            b = base + (i + 1) % nodes_per_graph
            src_list += [a, b]
            dst_list += [b, a]
    edge_index = jnp.array([src_list, dst_list], dtype=jnp.int32)  # (2, E)
    batch = jnp.repeat(jnp.arange(num_graphs, dtype=jnp.int32), nodes_per_graph)

    # graph operands built once (hoisted out of the per-step forward)
    adj, pool, inv_counts = prepare_graph(edge_index, batch, n_nodes, num_graphs)

    out = general_convnet_forward(x, adj, pool, inv_counts, num_graphs, params)
    out = jax.block_until_ready(out)
    assert out.shape == (num_graphs, out_dim)
    assert bool(jnp.all(jnp.isfinite(out)))
    print("KERNEL_OK")
</pallas_src>

<mosaic_0001>
module attributes {stable_mosaic.version = 11 : i64} {
  func.func @kernel(%arg0: memref<128x128xf32, #tpu.memory_space<vmem>>, %arg1: memref<128x128xbf16, #tpu.memory_space<vmem>>, %arg2: memref<8x128xbf16, #tpu.memory_space<vmem>>, %arg3: memref<8x128xf32, #tpu.memory_space<vmem>>, %arg4: memref<128x256xbf16, #tpu.memory_space<vmem>>, %arg5: memref<1x256xf32, #tpu.memory_space<vmem>>, %arg6: memref<1x128x128xbf16, #tpu.memory_space<vmem>>, %arg7: memref<1x1x128xf32, #tpu.memory_space<vmem>>, %arg8: memref<128x256xbf16, #tpu.memory_space<vmem>>, %arg9: memref<1x256xf32, #tpu.memory_space<vmem>>, %arg10: memref<128x128xf32, #tpu.memory_space<vmem>>, %arg11: memref<1x128xf32, #tpu.memory_space<vmem>>, %arg12: memref<8x128xf32, #tpu.memory_space<vmem>>) attributes {dimension_semantics = [], scalar_prefetch = 0 : i64, scratch_operands = 0 : i64, tpu.core_type = #tpu.core_type<tc>} {
    %c0 = arith.constant 0 : index
    %c0_0 = arith.constant 0 : index
    %0 = vector.load %arg1[%c0, %c0_0] : memref<128x128xbf16, #tpu.memory_space<vmem>>, vector<128x128xbf16>
    %c0_1 = arith.constant 0 : index
    %c0_2 = arith.constant 0 : index
    %1 = vector.load %arg0[%c0_1, %c0_2] : memref<128x128xf32, #tpu.memory_space<vmem>>, vector<128x128xf32>
    %c0_3 = arith.constant 0 : index
    %c0_4 = arith.constant 0 : index
    %2 = vector.load %arg4[%c0_3, %c0_4] : memref<128x256xbf16, #tpu.memory_space<vmem>>, vector<128x256xbf16>
    %c0_5 = arith.constant 0 : index
    %c0_6 = arith.constant 0 : index
    %3 = vector.load %arg5[%c0_5, %c0_6] : memref<1x256xf32, #tpu.memory_space<vmem>>, vector<1x256xf32>
    %4 = arith.truncf %1 : vector<128x128xf32> to vector<128x128xbf16>
    %cst = arith.constant dense<0.000000e+00> : vector<128x256xf32>
    %5 = tpu.matmul %4, %2, %cst {dimension_numbers = #tpu.dot_dimension_numbers<[1], [0], [0], [1], [0, 0, 1, 1], [], []>} : vector<128x128xbf16>, vector<128x256xbf16>, vector<128x256xf32> -> vector<128x256xf32>
    %6 = vector.broadcast %3 : vector<1x256xf32> to vector<128x256xf32>
    %7 = arith.addf %5, %6 : vector<128x256xf32>
    %8 = vector.extract_strided_slice %7 {offsets = [0, 0], sizes = [128, 128], strides = [1, 1]} : vector<128x256xf32> to vector<128x128xf32>
    %9 = vector.extract_strided_slice %7 {offsets = [0, 128], sizes = [128, 128], strides = [1, 1]} : vector<128x256xf32> to vector<128x128xf32>
    %10 = arith.truncf %8 : vector<128x128xf32> to vector<128x128xbf16>
    %cst_7 = arith.constant dense<0.000000e+00> : vector<128x128xf32>
    %11 = tpu.matmul %0, %10, %cst_7 {dimension_numbers = #tpu.dot_dimension_numbers<[1], [0], [0], [1], [0, 0, 1, 1], [], []>} : vector<128x128xbf16>, vector<128x128xbf16>, vector<128x128xf32> -> vector<128x128xf32>
    %12 = arith.addf %11, %9 : vector<128x128xf32>
    %c0_i32 = arith.constant 0 : i32
    %13 = arith.index_cast %c0_i32 : i32 to index
    %c0_8 = arith.constant 0 : index
    %c0_9 = arith.constant 0 : index
    %14 = vector.load %arg6[%13, %c0_8, %c0_9] : memref<1x128x128xbf16, #tpu.memory_space<vmem>>, vector<1x128x128xbf16>
    %15 = vector.shape_cast %14 : vector<1x128x128xbf16> to vector<128x128xbf16>
    %16 = arith.index_cast %c0_i32 : i32 to index
    %c0_10 = arith.constant 0 : index
    %c0_11 = arith.constant 0 : index
    %17 = vector.load %arg7[%16, %c0_10, %c0_11] : memref<1x1x128xf32, #tpu.memory_space<vmem>>, vector<1x1x128xf32>
    %18 = vector.shape_cast %17 : vector<1x1x128xf32> to vector<1x128xf32>
    %19 = arith.truncf %12 : vector<128x128xf32> to vector<128x128xbf16>
    %cst_12 = arith.constant dense<0.000000e+00> : vector<128x128xf32>
    %20 = tpu.matmul %19, %15, %cst_12 {dimension_numbers = #tpu.dot_dimension_numbers<[1], [0], [0], [1], [0, 0, 1, 1], [], []>} : vector<128x128xbf16>, vector<128x128xbf16>, vector<128x128xf32> -> vector<128x128xf32>
    %21 = vector.broadcast %18 : vector<1x128xf32> to vector<128x128xf32>
    %22 = arith.addf %20, %21 : vector<128x128xf32>
    %23 = arith.truncf %22 : vector<128x128xf32> to vector<128x128xbf16>
    %cst_13 = arith.constant dense<0.000000e+00> : vector<128x128xf32>
    %24 = tpu.matmul %0, %23, %cst_13 {dimension_numbers = #tpu.dot_dimension_numbers<[1], [0], [0], [1], [0, 0, 1, 1], [], []>} : vector<128x128xbf16>, vector<128x128xbf16>, vector<128x128xf32> -> vector<128x128xf32>
    %25 = arith.addf %24, %12 : vector<128x128xf32>
    %c1_i32 = arith.constant 1 : i32
    %c0_14 = arith.constant 0 : index
    %c0_15 = arith.constant 0 : index
    %26 = vector.load %arg8[%c0_14, %c0_15] : memref<128x256xbf16, #tpu.memory_space<vmem>>, vector<128x256xbf16>
    %c0_16 = arith.constant 0 : index
    %c0_17 = arith.constant 0 : index
    %27 = vector.load %arg9[%c0_16, %c0_17] : memref<1x256xf32, #tpu.memory_space<vmem>>, vector<1x256xf32>
    %28 = arith.truncf %25 : vector<128x128xf32> to vector<128x128xbf16>
    %cst_18 = arith.constant dense<0.000000e+00> : vector<128x256xf32>
    %29 = tpu.matmul %28, %26, %cst_18 {dimension_numbers = #tpu.dot_dimension_numbers<[1], [0], [0], [1], [0, 0, 1, 1], [], []>} : vector<128x128xbf16>, vector<128x256xbf16>, vector<128x256xf32> -> vector<128x256xf32>
    %30 = vector.broadcast %27 : vector<1x256xf32> to vector<128x256xf32>
    %31 = arith.addf %29, %30 : vector<128x256xf32>
    %32 = vector.extract_strided_slice %31 {offsets = [0, 0], sizes = [128, 128], strides = [1, 1]} : vector<128x256xf32> to vector<128x128xf32>
    %33 = vector.extract_strided_slice %31 {offsets = [0, 128], sizes = [128, 128], strides = [1, 1]} : vector<128x256xf32> to vector<128x128xf32>
    %34 = arith.truncf %32 : vector<128x128xf32> to vector<128x128xbf16>
    %cst_19 = arith.constant dense<0.000000e+00> : vector<128x128xf32>
    %35 = tpu.matmul %0, %34, %cst_19 {dimension_numbers = #tpu.dot_dimension_numbers<[1], [0], [0], [1], [0, 0, 1, 1], [], []>} : vector<128x128xbf16>, vector<128x128xbf16>, vector<128x128xf32> -> vector<128x128xf32>
    %36 = arith.addf %35, %33 : vector<128x128xf32>
    %c0_20 = arith.constant 0 : index
    %c0_21 = arith.constant 0 : index
    %37 = vector.load %arg2[%c0_20, %c0_21] : memref<8x128xbf16, #tpu.memory_space<vmem>>, vector<8x128xbf16>
    %38 = arith.truncf %36 : vector<128x128xf32> to vector<128x128xbf16>
    %cst_22 = arith.constant dense<0.000000e+00> : vector<8x128xf32>
    %39 = tpu.matmul %37, %38, %cst_22 {dimension_numbers = #tpu.dot_dimension_numbers<[1], [0], [0], [1], [0, 0, 1, 1], [], []>} : vector<8x128xbf16>, vector<128x128xbf16>, vector<8x128xf32> -> vector<8x128xf32>
    %c0_23 = arith.constant 0 : index
    %c0_24 = arith.constant 0 : index
    %40 = vector.load %arg3[%c0_23, %c0_24] : memref<8x128xf32, #tpu.memory_space<vmem>>, vector<8x128xf32>
    %41 = arith.mulf %39, %40 : vector<8x128xf32>
    %c0_25 = arith.constant 0 : index
    %c0_26 = arith.constant 0 : index
    %42 = vector.load %arg10[%c0_25, %c0_26] : memref<128x128xf32, #tpu.memory_space<vmem>>, vector<128x128xf32>
    %cst_27 = arith.constant dense<0.000000e+00> : vector<8x128xf32>
    %43 = tpu.matmul %41, %42, %cst_27 {dimension_numbers = #tpu.dot_dimension_numbers<[1], [0], [0], [1], [0, 0, 1, 1], [], []>} : vector<8x128xf32>, vector<128x128xf32>, vector<8x128xf32> -> vector<8x128xf32>
    %c0_28 = arith.constant 0 : index
    %c0_29 = arith.constant 0 : index
    %44 = vector.load %arg11[%c0_28, %c0_29] : memref<1x128xf32, #tpu.memory_space<vmem>>, vector<1x128xf32>
    %45 = vector.broadcast %44 : vector<1x128xf32> to vector<8x128xf32>
    %46 = arith.addf %43, %45 : vector<8x128xf32>
    %47 = tpu.iota {dimensions = array<i32: 1>} : vector<8x128xi32>
    %c5_i32 = arith.constant 5 : i32
    %48 = vector.broadcast %c5_i32 : i32 to vector<8x128xi32>
    %49 = arith.cmpi slt, %47, %48 : vector<8x128xi32>
    %cst_30 = arith.constant 0xFF800000 : f32
    %50 = vector.broadcast %cst_30 : f32 to vector<8x128xf32>
    %51 = arith.select %49, %46, %50 : vector<8x128xi1>, vector<8x128xf32>
    %cst_31 = arith.constant dense<0xFF800000> : vector<8xf32>
    %52 = vector.multi_reduction <maximumf>, %51, %cst_31 [1] : vector<8x128xf32> to vector<8xf32>
    %53 = vector.shape_cast %52 : vector<8xf32> to vector<8x1xf32>
    %54 = vector.broadcast %53 : vector<8x1xf32> to vector<8x128xf32>
    %55 = arith.subf %51, %54 : vector<8x128xf32>
    %56 = math.exp %55 : vector<8x128xf32>
    %cst_32 = arith.constant dense<0.000000e+00> : vector<8xf32>
    %57 = vector.multi_reduction <add>, %56, %cst_32 [1] : vector<8x128xf32> to vector<8xf32>
    %58 = vector.shape_cast %57 : vector<8xf32> to vector<8x1xf32>
    %59 = math.log %58 : vector<8x1xf32>
    %60 = vector.broadcast %59 : vector<8x1xf32> to vector<8x128xf32>
    %61 = arith.subf %55, %60 : vector<8x128xf32>
    %c0_33 = arith.constant 0 : index
    %c0_34 = arith.constant 0 : index
    %62 = vector.load %arg12[%c0_33, %c0_34] : memref<8x128xf32, #tpu.memory_space<vmem>>, vector<8x128xf32>
    tpu.vector_store %arg12[%c0_33, %c0_34], %61 {strides = array<i32>} : memref<8x128xf32, #tpu.memory_space<vmem>>, vector<8x128xf32>,
    return
  }
}

</mosaic_0001>

<llo_original>
// kernel: tpu_custom_call.1
$region0: #{tpu_custom_call.1}
  #allocation0 [shape = 'u32[]', space=smem, size = 0x4, offset = 0x4, fixed_abs, tag = 'smem constant byte address 0x4 - core index']
  #allocation1 [shape = 'u32[144,128]{1,0:T(1,128)}', space=vmem, size = 0x12000, scoped, tag = 'internal scratch']
  %s0 = inlined_call_operand.hbm [shape: f32[128,128], index: 0, kind: input, shape index: {}]
  %s1 = inlined_call_operand.hbm [shape: bf16[128,128], index: 1, kind: input, shape index: {}]
  %s2 = inlined_call_operand.hbm [shape: bf16[8,128], index: 2, kind: input, shape index: {}]
  %s3 = inlined_call_operand.vmem [shape: f32[8,128], index: 3, kind: input, shape index: {}]
  %s4 = inlined_call_operand.hbm [shape: bf16[128,256], index: 4, kind: input, shape index: {}]
  %s5 = inlined_call_operand.vmem [shape: f32[1,256], index: 5, kind: input, shape index: {}]
  %s6 = inlined_call_operand.hbm [shape: bf16[1,128,128], index: 6, kind: input, shape index: {}]
  %s7 = inlined_call_operand.vmem [shape: f32[1,1,128], index: 7, kind: input, shape index: {}]
  %s8 = inlined_call_operand.hbm [shape: bf16[128,256], index: 8, kind: input, shape index: {}]
  %s9 = inlined_call_operand.vmem [shape: f32[1,256], index: 9, kind: input, shape index: {}]
  %s10 = inlined_call_operand.hbm [shape: f32[128,128], index: 10, kind: input, shape index: {}]
  %s11 = inlined_call_operand.vmem [shape: f32[1,128], index: 11, kind: input, shape index: {}]
  %s12 = inlined_call_operand.hbm [shape: f32[8,128], index: 12, kind: output, shape index: {}]
  %s13 = sld [smem:[#allocation0]]
  $region86: #{tpu_custom_call.1} parent=0
    _
  %s15 = ssub.s32 1, %s13
  %s16 = scalar_select 0, %s15, %s13
  $region1: #{tpu_custom_call.1} parent=0
    #allocation2 [shape = 'u8[65536]{0}', space=vmem, size = 0x10000, scoped, tag = 'input window, operand 0, single buffered']
    #allocation3 [shape = 's32[1]{0}', space=sflag, size = 0x4, scoped, tag = 'scoped memory for tpu_custom_call.1']
    #allocation4 [shape = 's32[1]{0}', space=sflag, size = 0x4, scoped, tag = 'scoped memory for tpu_custom_call.1']
    #allocation5 [shape = 'u8[32768]{0}', space=vmem, size = 0x8000, scoped, tag = 'input window, operand 1, single buffered']
    #allocation6 [shape = 's32[1]{0}', space=sflag, size = 0x4, scoped, tag = 'scoped memory for tpu_custom_call.1']
    #allocation7 [shape = 'u8[2048]{0}', space=vmem, size = 0x800, scoped, tag = 'input window, operand 2, single buffered']
    #allocation8 [shape = 'u8[65536]{0}', space=vmem, size = 0x10000, scoped, tag = 'input window, operand 4, single buffered']
    #allocation9 [shape = 's32[1]{0}', space=sflag, size = 0x4, scoped, tag = 'scoped memory for tpu_custom_call.1']
    #allocation10 [shape = 'u8[32768]{0}', space=vmem, size = 0x8000, scoped, tag = 'input window, operand 6, single buffered']
    #allocation11 [shape = 'u8[65536]{0}', space=vmem, size = 0x10000, scoped, tag = 'input window, operand 8, single buffered']
    #allocation12 [shape = 's32[1]{0}', space=sflag, size = 0x4, scoped, tag = 'scoped memory for tpu_custom_call.1']
    #allocation13 [shape = 'u8[65536]{0}', space=vmem, size = 0x10000, scoped, tag = 'input window, operand 10, single buffered']
    #allocation14 [shape = 'u8[4096]{0}', space=vmem, size = 0x1000, scoped, tag = 'output window, operand 0, single buffered']
    %17 = vsyncpa [#allocation3], 0
    %18 = vsyncpa [#allocation6], 0
    %19 = vsyncpa [#allocation9], 0
    %20 = vsyncpa [#allocation12], 0
    %21 = vsyncpa [#allocation4], 0
    // Predicated region
    $region2: #{tpu_custom_call.1} parent=1 // pred_check
      _
    $region3: #{tpu_custom_call.1} parent=1 // pred_check_branch
      %23 = sbr.rel (0) target = $region5
    $region4: #{tpu_custom_call.1} parent=1 // pred_region
      %s25 = ssub.s32 2048, 2048
      %26 = vsyncadd [#allocation3], %s25
      %s27 = sshll.u32 [#allocation2], 4
      %s28 = int_to_ptr.vmem [resolvable:$true] %s27
      %33 = dma.hbm_to_vmem [thread:$0]  %s0, 2048, %s28, [#allocation3], 128, 128, 8
    $region5: #{tpu_custom_call.1} parent=1 // pred_fallthru
      _
    // Predicated region
    $region6: #{tpu_custom_call.1} parent=1 // pred_check
      _
    $region7: #{tpu_custom_call.1} parent=1 // pred_check_branch
      %35 = sbr.rel (0) target = $region9
    $region8: #{tpu_custom_call.1} parent=1 // pred_region
      %s37 = ssub.s32 1024, 1024
      %38 = vsyncadd [#allocation6], %s37
      %s39 = sshll.u32 [#allocation5], 4
      %s40 = int_to_ptr.vmem [resolvable:$true] %s39
      %45 = dma.hbm_to_vmem [thread:$0]  %s1, 1024, %s40, [#allocation6], 64, 64, 4
    $region9: #{tpu_custom_call.1} parent=1 // pred_fallthru
      _
    // Predicated region
    $region10: #{tpu_custom_call.1} parent=1 // pred_check
      _
    $region11: #{tpu_custom_call.1} parent=1 // pred_check_branch
      %47 = sbr.rel (0) target = $region13
    $region12: #{tpu_custom_call.1} parent=1 // pred_region
      %s49 = ssub.s32 64, 64
      %50 = vsyncadd [#allocation6], %s49
      %s52 = sshll.u32 [#allocation7], 4
      %s53 = int_to_ptr.vmem [resolvable:$true] %s52
      %55 = dma.hbm_to_vmem [thread:$0]  %s2, 64, %s53, [#allocation6]
    $region13: #{tpu_custom_call.1} parent=1 // pred_fallthru
      _
    // Predicated region
    $region14: #{tpu_custom_call.1} parent=1 // pred_check
      _
    $region15: #{tpu_custom_call.1} parent=1 // pred_check_branch
      %57 = sbr.rel (0) target = $region17
    $region16: #{tpu_custom_call.1} parent=1 // pred_region
      _
    $region17: #{tpu_custom_call.1} parent=1 // pred_fallthru
      _
    // Predicated region
    $region18: #{tpu_custom_call.1} parent=1 // pred_check
      _
    $region19: #{tpu_custom_call.1} parent=1 // pred_check_branch
      %59 = sbr.rel (0) target = $region21
    $region20: #{tpu_custom_call.1} parent=1 // pred_region
      %s61 = ssub.s32 2048, 2048
      %62 = vsyncadd [#allocation9], %s61
      %s63 = sshll.u32 [#allocation8], 4
      %s64 = int_to_ptr.vmem [resolvable:$true] %s63
      %69 = dma.hbm_to_vmem [thread:$0]  %s4, 2048, %s64, [#allocation9], 128, 128, 8
    $region21: #{tpu_custom_call.1} parent=1 // pred_fallthru
      _
    // Predicated region
    $region22: #{tpu_custom_call.1} parent=1 // pred_check
      _
    $region23: #{tpu_custom_call.1} parent=1 // pred_check_branch
      %71 = sbr.rel (0) target = $region25
    $region24: #{tpu_custom_call.1} parent=1 // pred_region
      _
    $region25: #{tpu_custom_call.1} parent=1 // pred_fallthru
      _
    // Predicated region
    $region26: #{tpu_custom_call.1} parent=1 // pred_check
      _
    $region27: #{tpu_custom_call.1} parent=1 // pred_check_branch
      %73 = sbr.rel (0) target = $region29
    $region28: #{tpu_custom_call.1} parent=1 // pred_region
      %s75 = ssub.s32 1024, 1024
      %76 = vsyncadd [#allocation9], %s75
      %s77 = sshll.u32 [#allocation10], 4
      %s78 = int_to_ptr.vmem [resolvable:$true] %s77
      %83 = dma.hbm_to_vmem [thread:$0]  %s6, 1024, %s78, [#allocation9], 64, 64, 4
    $region29: #{tpu_custom_call.1} parent=1 // pred_fallthru
      _
    // Predicated region
    $region30: #{tpu_custom_call.1} parent=1 // pred_check
      _
    $region31: #{tpu_custom_call.1} parent=1 // pred_check_branch
      %85 = sbr.rel (0) target = $region33
    $region32: #{tpu_custom_call.1} parent=1 // pred_region
      _
    $region33: #{tpu_custom_call.1} parent=1 // pred_fallthru
      _
    // Predicated region
    $region34: #{tpu_custom_call.1} parent=1 // pred_check
      _
    $region35: #{tpu_custom_call.1} parent=1 // pred_check_branch
      %87 = sbr.rel (0) target = $region37
    $region36: #{tpu_custom_call.1} parent=1 // pred_region
      %s89 = ssub.s32 2048, 2048
      %90 = vsyncadd [#allocation12], %s89
      %s91 = sshll.u32 [#allocation11], 4
      %s92 = int_to_ptr.vmem [resolvable:$true] %s91
      %97 = dma.hbm_to_vmem [thread:$0]  %s8, 2048, %s92, [#allocation12], 128, 128, 8
    $region37: #{tpu_custom_call.1} parent=1 // pred_fallthru
      _
    // Predicated region
    $region38: #{tpu_custom_call.1} parent=1 // pred_check
      _
    $region39: #{tpu_custom_call.1} parent=1 // pred_check_branch
      %99 = sbr.rel (0) target = $region41
    $region40: #{tpu_custom_call.1} parent=1 // pred_region
      _
    $region41: #{tpu_custom_call.1} parent=1 // pred_fallthru
      _
    // Predicated region
    $region42: #{tpu_custom_call.1} parent=1 // pred_check
      _
    $region43: #{tpu_custom_call.1} parent=1 // pred_check_branch
      %101 = sbr.rel (0) target = $region45
    $region44: #{tpu_custom_call.1} parent=1 // pred_region
      %s103 = ssub.s32 2048, 2048
      %104 = vsyncadd [#allocation12], %s103
      %s105 = sshll.u32 [#allocation13], 4
      %s106 = int_to_ptr.vmem [resolvable:$true] %s105
      %111 = dma.hbm_to_vmem [thread:$0]  %s10, 2048, %s106, [#allocation12], 128, 128, 8
    $region45: #{tpu_custom_call.1} parent=1 // pred_fallthru
      _
    // Predicated region
    $region46: #{tpu_custom_call.1} parent=1 // pred_check
      _
    $region47: #{tpu_custom_call.1} parent=1 // pred_check_branch
      %113 = sbr.rel (0) target = $region49
    $region48: #{tpu_custom_call.1} parent=1 // pred_region
      _
    $region49: #{tpu_custom_call.1} parent=1 // pred_fallthru
      _
    // Predicated region
    $region50: #{tpu_custom_call.1} parent=1 // pred_check
      _
    $region51: #{tpu_custom_call.1} parent=1 // pred_check_branch
      %115 = sbr.rel (0) target = $region53
    $region52: #{tpu_custom_call.1} parent=1 // pred_region
      %116 = dma.done [#allocation3], 2048
    $region53: #{tpu_custom_call.1} parent=1 // pred_fallthru
      _
    // Predicated region
    $region54: #{tpu_custom_call.1} parent=1 // pred_check
      _
    $region55: #{tpu_custom_call.1} parent=1 // pred_check_branch
      %118 = sbr.rel (0) target = $region57
    $region56: #{tpu_custom_call.1} parent=1 // pred_region
      %119 = dma.done [#allocation6], 1024
    $region57: #{tpu_custom_call.1} parent=1 // pred_fallthru
      _
    // Predicated region
    $region58: #{tpu_custom_call.1} parent=1 // pred_check
      _
    $region59: #{tpu_custom_call.1} parent=1 // pred_check_branch
      %121 = sbr.rel (0) target = $region61
    $region60: #{tpu_custom_call.1} parent=1 // pred_region
      %122 = dma.done [#allocation6], 64
    $region61: #{tpu_custom_call.1} parent=1 // pred_fallthru
      _
    // Predicated region
    $region62: #{tpu_custom_call.1} parent=1 // pred_check
      _
    $region63: #{tpu_custom_call.1} parent=1 // pred_check_branch
      %124 = sbr.rel (0) target = $region65
    $region64: #{tpu_custom_call.1} parent=1 // pred_region
      %125 = dma.done [#allocation9], 2048
    $region65: #{tpu_custom_call.1} parent=1 // pred_fallthru
      _
    // Predicated region
    $region66: #{tpu_custom_call.1} parent=1 // pred_check
      _
    $region67: #{tpu_custom_call.1} parent=1 // pred_check_branch
      %127 = sbr.rel (0) target = $region69
    $region68: #{tpu_custom_call.1} parent=1 // pred_region
      %128 = dma.done [#allocation9], 1024
    $region69: #{tpu_custom_call.1} parent=1 // pred_fallthru
      _
    // Predicated region
    $region70: #{tpu_custom_call.1} parent=1 // pred_check
      _
    $region71: #{tpu_custom_call.1} parent=1 // pred_check_branch
      %130 = sbr.rel (0) target = $region73
    $region72: #{tpu_custom_call.1} parent=1 // pred_region
      %131 = dma.done [#allocation12], 2048
    $region73: #{tpu_custom_call.1} parent=1 // pred_fallthru
      _
    // Predicated region
    $region74: #{tpu_custom_call.1} parent=1 // pred_check
      _
    $region75: #{tpu_custom_call.1} parent=1 // pred_check_branch
      %133 = sbr.rel (0) target = $region77
    $region76: #{tpu_custom_call.1} parent=1 // pred_region
      %134 = dma.done [#allocation12], 2048
    $region77: #{tpu_custom_call.1} parent=1 // pred_fallthru
      _
    %v136 = vld [vmem:[#allocation5] sm:$0xf]
    %v137 = vld [vmem:[#allocation5 + $0x4] sm:$0xf]
    %v138 = vld [vmem:[#allocation5 + $0x8] sm:$0xf]
    %v139 = vld [vmem:[#allocation5 + $0xc] sm:$0xf]
    %v140 = vld [vmem:[#allocation5 + $0x10] sm:$0xf]
    %v141 = vld [vmem:[#allocation5 + $0x14] sm:$0xf]
    %v142 = vld [vmem:[#allocation5 + $0x18] sm:$0xf]
    %v143 = vld [vmem:[#allocation5 + $0x1c] sm:$0xf]
    %v144 = vld [vmem:[#allocation5 + $0x20] sm:$0xf]
    %v145 = vld [vmem:[#allocation5 + $0x24] sm:$0xf]
    %v146 = vld [vmem:[#allocation5 + $0x28] sm:$0xf]
    %v147 = vld [vmem:[#allocation5 + $0x2c] sm:$0xf]
    %v148 = vld [vmem:[#allocation5 + $0x30] sm:$0xf]
    %v149 = vld [vmem:[#allocation5 + $0x34] sm:$0xf]
    %v150 = vld [vmem:[#allocation5 + $0x38] sm:$0xf]
    %v151 = vld [vmem:[#allocation5 + $0x3c] sm:$0xf]
    %v152 = vld [vmem:[#allocation2] sm:$0xff]
    %v153 = vld [vmem:[#allocation2 + $0x8] sm:$0xff]
    %v154 = vld [vmem:[#allocation2 + $0x10] sm:$0xff]
    %v155 = vld [vmem:[#allocation2 + $0x18] sm:$0xff]
    %v156 = vld [vmem:[#allocation2 + $0x20] sm:$0xff]
    %v157 = vld [vmem:[#allocation2 + $0x28] sm:$0xff]
    %v158 = vld [vmem:[#allocation2 + $0x30] sm:$0xff]
    %v159 = vld [vmem:[#allocation2 + $0x38] sm:$0xff]
    %v160 = vld [vmem:[#allocation2 + $0x40] sm:$0xff]
    %v161 = vld [vmem:[#allocation2 + $0x48] sm:$0xff]
    %v162 = vld [vmem:[#allocation2 + $0x50] sm:$0xff]
    %v163 = vld [vmem:[#allocation2 + $0x58] sm:$0xff]
    %v164 = vld [vmem:[#allocation2 + $0x60] sm:$0xff]
    %v165 = vld [vmem:[#allocation2 + $0x68] sm:$0xff]
    %v166 = vld [vmem:[#allocation2 + $0x70] sm:$0xff]
    %v167 = vld [vmem:[#allocation2 + $0x78] sm:$0xff]
    %v168 = vld [vmem:[#allocation8] sm:$0xff]
    %v169 = vld [vmem:[#allocation8 + $0x8] sm:$0xff]
    %v170 = vld [vmem:[#allocation8 + $0x10] sm:$0xff]
    %v171 = vld [vmem:[#allocation8 + $0x18] sm:$0xff]
    %v172 = vld [vmem:[#allocation8 + $0x20] sm:$0xff]
    %v173 = vld [vmem:[#allocation8 + $0x28] sm:$0xff]
    %v174 = vld [vmem:[#allocation8 + $0x30] sm:$0xff]
    %v175 = vld [vmem:[#allocation8 + $0x38] sm:$0xff]
    %v176 = vld [vmem:[#allocation8 + $0x40] sm:$0xff]
    %v177 = vld [vmem:[#allocation8 + $0x48] sm:$0xff]
    %v178 = vld [vmem:[#allocation8 + $0x50] sm:$0xff]
    %v179 = vld [vmem:[#allocation8 + $0x58] sm:$0xff]
    %v180 = vld [vmem:[#allocation8 + $0x60] sm:$0xff]
    %v181 = vld [vmem:[#allocation8 + $0x68] sm:$0xff]
    %v182 = vld [vmem:[#allocation8 + $0x70] sm:$0xff]
    %v183 = vld [vmem:[#allocation8 + $0x78] sm:$0xff]
    %v184 = vld [vmem:[%s5] sm:$0x3]
    %v185 = vpack.c.bf16 %v153, %v152
    %v186 = vpack.c.bf16 %v155, %v154
    %v187 = vpack.c.bf16 %v157, %v156
    %v188 = vpack.c.bf16 %v159, %v158
    %v189 = vpack.c.bf16 %v161, %v160
    %v190 = vpack.c.bf16 %v163, %v162
    %v191 = vpack.c.bf16 %v165, %v164
    %v192 = vpack.c.bf16 %v167, %v166
    %v194 = vlaneseq
    %v195 = vshrl.u32 %v194, 7
    %v196 = vsub.s32 0, %v195
    %v197 = vrot.slane %v184, %v196
    %v198 = vlaneseq
    %v199 = vshrl.u32 %v198, 7
    %v200 = vsub.s32 1, %v199
    %v201 = vrot.slane %v184, %v200
    %v220 = vunpack.c.l.b16 %v168
    %v221 = vunpack.c.h.b16 %v168
    %v222 = vunpack.c.l.b16 %v169
    %v223 = vunpack.c.h.b16 %v169
    %v224 = vunpack.c.l.b16 %v170
    %v225 = vunpack.c.h.b16 %v170
    %v226 = vunpack.c.l.b16 %v171
    %v227 = vunpack.c.h.b16 %v171
    %v228 = vunpack.c.l.b16 %v172
    %v229 = vunpack.c.h.b16 %v172
    %v230 = vunpack.c.l.b16 %v173
    %v231 = vunpack.c.h.b16 %v173
    %v232 = vunpack.c.l.b16 %v174
    %v233 = vunpack.c.h.b16 %v174
    %v234 = vunpack.c.l.b16 %v175
    %v235 = vunpack.c.h.b16 %v175
    %v236 = vunpack.c.l.b16 %v176
    %v237 = vunpack.c.h.b16 %v176
    %v238 = vunpack.c.l.b16 %v177
    %v239 = vunpack.c.h.b16 %v177
    %v240 = vunpack.c.l.b16 %v178
    %v241 = vunpack.c.h.b16 %v178
    %v242 = vunpack.c.l.b16 %v179
    %v243 = vunpack.c.h.b16 %v179
    %v244 = vunpack.c.l.b16 %v180
    %v245 = vunpack.c.h.b16 %v180
    %v246 = vunpack.c.l.b16 %v181
    %v247 = vunpack.c.h.b16 %v181
    %v248 = vunpack.c.l.b16 %v182
    %v249 = vunpack.c.h.b16 %v182
    %v250 = vunpack.c.l.b16 %v183
    %v251 = vunpack.c.h.b16 %v183
    %v252 = vpack.c.b16 %v222, %v220
    %v253 = vpack.c.b16 %v223, %v221
    %v254 = vpack.c.b16 %v226, %v224
    %v255 = vpack.c.b16 %v227, %v225
    %v256 = vpack.c.b16 %v230, %v228
    %v257 = vpack.c.b16 %v231, %v229
    %v258 = vpack.c.b16 %v234, %v232
    %v259 = vpack.c.b16 %v235, %v233
    %v260 = vpack.c.b16 %v238, %v236
    %v261 = vpack.c.b16 %v239, %v237
    %v262 = vpack.c.b16 %v242, %v240
    %v263 = vpack.c.b16 %v243, %v241
    %v264 = vpack.c.b16 %v246, %v244
    %v265 = vpack.c.b16 %v247, %v245
    %v266 = vpack.c.b16 %v250, %v248
    %v267 = vpack.c.b16 %v251, %v249
    %284 = vmatprep.subr.bf16.mxu0 %v253
    %285 = vmatpush1.bf16.msra.mxu0 %v252
    %286 = vmatprep.subr.bf16.mxu0 %v255
    %287 = vmatpush1.bf16.msra.mxu0 %v254
    %288 = vmatprep.subr.bf16.mxu0 %v257
    %289 = vmatpush1.bf16.msra.mxu0 %v256
    %290 = vmatprep.subr.bf16.mxu0 %v259
    %291 = vmatpush1.bf16.msra.mxu0 %v258
    %292 = vmatprep.subr.bf16.mxu0 %v261
    %293 = vmatpush1.bf16.msra.mxu0 %v260
    %294 = vmatprep.subr.bf16.mxu0 %v263
    %295 = vmatpush1.bf16.msra.mxu0 %v262
    %296 = vmatprep.subr.bf16.mxu0 %v265
    %297 = vmatpush1.bf16.msra.mxu0 %v264
    %298 = vmatprep.subr.bf16.mxu0 %v267
    %299 = vmatpush1.bf16.msra.mxu0 %v266
    %300 = vmatprep.subr.bf16.mxu0 0
    %301 = vmatpush1.bf16.msra.mxu0 0
    %302 = vmatprep.subr.bf16.mxu0 0
    %303 = vmatpush1.bf16.msra.mxu0 0
    %304 = vmatprep.subr.bf16.mxu0 0
    %305 = vmatpush1.bf16.msra.mxu0 0
    %306 = vmatprep.subr.bf16.mxu0 0
    %307 = vmatpush1.bf16.msra.mxu0 0
    %308 = vmatprep.subr.bf16.mxu0 0
    %309 = vmatpush1.bf16.msra.mxu0 0
    %310 = vmatprep.subr.bf16.mxu0 0
    %311 = vmatpush1.bf16.msra.mxu0 0
    %312 = vmatprep.subr.bf16.mxu0 0
    %313 = vmatpush1.bf16.msra.mxu0 0
    %314 = vmatprep.subr.bf16.mxu0 0
    %315 = vmatpush1.bf16.msra.mxu0 0
    %316 = vmatprep.mubr.bf16.mxu0 0
    %317 = vmatmul.mubr.bf16.gmra.mrb[0].mxu0 %v185
    %v318 = vpop.f32.mrb[0].mxu0
    %v319 = vadd.f32 %v197, %v318
    %v320 = vpop.f32.mrb[0].mxu0
    %v321 = vadd.f32 %v201, %v320
    %v322 = vpop.f32.mrb[0].mxu0
    %v323 = vadd.f32 %v197, %v322
    %v324 = vpop.f32.mrb[0].mxu0
    %v325 = vadd.f32 %v201, %v324
    %326 = vmatprep.mubr.bf16.mxu0 0
    %327 = vmatmul.mubr.bf16.gmra.mrb[0].mxu0 %v186
    %v328 = vpop.f32.mrb[0].mxu0
    %v329 = vadd.f32 %v197, %v328
    %v330 = vpop.f32.mrb[0].mxu0
    %v331 = vadd.f32 %v201, %v330
    %v332 = vpop.f32.mrb[0].mxu0
    %v333 = vadd.f32 %v197, %v332
    %v334 = vpop.f32.mrb[0].mxu0
    %v335 = vadd.f32 %v201, %v334
    %336 = vmatprep.mubr.bf16.mxu0 0
    %337 = vmatmul.mubr.bf16.gmra.mrb[0].mxu0 %v187
    %v338 = vpop.f32.mrb[0].mxu0
    %v339 = vadd.f32 %v197, %v338
    %v340 = vpop.f32.mrb[0].mxu0
    %v341 = vadd.f32 %v201, %v340
    %v342 = vpop.f32.mrb[0].mxu0
    %v343 = vadd.f32 %v197, %v342
    %v344 = vpop.f32.mrb[0].mxu0
    %v345 = vadd.f32 %v201, %v344
    %346 = vmatprep.mubr.bf16.mxu0 0
    %347 = vmatmul.mubr.bf16.gmra.mrb[0].mxu0 %v188
    %v348 = vpop.f32.mrb[0].mxu0
    %v349 = vadd.f32 %v197, %v348
    %v350 = vpop.f32.mrb[0].mxu0
    %v351 = vadd.f32 %v201, %v350
    %v352 = vpop.f32.mrb[0].mxu0
    %v353 = vadd.f32 %v197, %v352
    %v354 = vpop.f32.mrb[0].mxu0
    %v355 = vadd.f32 %v201, %v354
    %356 = vmatprep.mubr.bf16.mxu0 0
    %357 = vmatmul.mubr.bf16.gmra.mrb[0].mxu0 %v189
    %v358 = vpop.f32.mrb[0].mxu0
    %v359 = vadd.f32 %v197, %v358
    %v360 = vpop.f32.mrb[0].mxu0
    %v361 = vadd.f32 %v201, %v360
    %v362 = vpop.f32.mrb[0].mxu0
    %v363 = vadd.f32 %v197, %v362
    %v364 = vpop.f32.mrb[0].mxu0
    %v365 = vadd.f32 %v201, %v364
    %366 = vmatprep.mubr.bf16.mxu0 0
    %367 = vmatmul.mubr.bf16.gmra.mrb[0].mxu0 %v190
    %v368 = vpop.f32.mrb[0].mxu0
    %v369 = vadd.f32 %v197, %v368
    %v370 = vpop.f32.mrb[0].mxu0
    %v371 = vadd.f32 %v201, %v370
    %v372 = vpop.f32.mrb[0].mxu0
    %v373 = vadd.f32 %v197, %v372
    %v374 = vpop.f32.mrb[0].mxu0
    %v375 = vadd.f32 %v201, %v374
    %376 = vmatprep.mubr.bf16.mxu0 0
    %377 = vmatmul.mubr.bf16.gmra.mrb[0].mxu0 %v191
    %v378 = vpop.f32.mrb[0].mxu0
    %v379 = vadd.f32 %v197, %v378
    %v380 = vpop.f32.mrb[0].mxu0
    %v381 = vadd.f32 %v201, %v380
    %v382 = vpop.f32.mrb[0].mxu0
    %v383 = vadd.f32 %v197, %v382
    %v384 = vpop.f32.mrb[0].mxu0
    %v385 = vadd.f32 %v201, %v384
    %386 = vmatprep.mubr.bf16.mxu0 0
    %387 = vmatmul.mubr.bf16.gmra.mrb[0].mxu0 %v192
    %v388 = vpop.f32.mrb[0].mxu0
    %v389 = vadd.f32 %v197, %v388
    %v390 = vpop.f32.mrb[0].mxu0
    %v391 = vadd.f32 %v201, %v390
    %v392 = vpop.f32.mrb[0].mxu0
    %v393 = vadd.f32 %v197, %v392
    %v394 = vpop.f32.mrb[0].mxu0
    %v395 = vadd.f32 %v201, %v394
    %396 = vdwg.mxu0
    %v397 = vpack.c.bf16 %v323, %v319
    %v398 = vpack.c.bf16 %v333, %v329
    %v399 = vpack.c.bf16 %v343, %v339
    %v400 = vpack.c.bf16 %v353, %v349
    %v401 = vpack.c.bf16 %v363, %v359
    %v402 = vpack.c.bf16 %v373, %v369
    %v403 = vpack.c.bf16 %v383, %v379
    %v404 = vpack.c.bf16 %v393, %v389
    %v421 = vunpack.c.l.b16 %v136
    %v422 = vunpack.c.l.b16 %v137
    %v423 = vunpack.c.l.b16 %v138
    %v424 = vunpack.c.l.b16 %v139
    %v425 = vunpack.c.l.b16 %v140
    %v426 = vunpack.c.l.b16 %v141
    %v427 = vunpack.c.l.b16 %v142
    %v428 = vunpack.c.l.b16 %v143
    %v429 = vunpack.c.l.b16 %v144
    %v430 = vunpack.c.l.b16 %v145
    %v431 = vunpack.c.l.b16 %v146
    %v432 = vunpack.c.l.b16 %v147
    %v433 = vunpack.c.l.b16 %v148
    %v434 = vunpack.c.l.b16 %v149
    %v435 = vunpack.c.l.b16 %v150
    %v436 = vunpack.c.l.b16 %v151
    %v437 = vpack.c.b16 %v422, %v421
    %v438 = vpack.c.b16 %v424, %v423
    %v439 = vpack.c.b16 %v426, %v425
    %v440 = vpack.c.b16 %v428, %v427
    %v441 = vpack.c.b16 %v430, %v429
    %v442 = vpack.c.b16 %v432, %v431
    %v443 = vpack.c.b16 %v434, %v433
    %v444 = vpack.c.b16 %v436, %v435
    %453 = vmatprep.subr.bf16.mxu0 0
    %454 = vmatpush1.bf16.msra.mxu0 %v397
    %455 = vmatprep.subr.bf16.mxu0 0
    %456 = vmatpush1.bf16.msra.mxu0 %v398
    %457 = vmatprep.subr.bf16.mxu0 0
    %458 = vmatpush1.bf16.msra.mxu0 %v399
    %459 = vmatprep.subr.bf16.mxu0 0
    %460 = vmatpush1.bf16.msra.mxu0 %v400
    %461 = vmatprep.subr.bf16.mxu0 0
    %462 = vmatpush1.bf16.msra.mxu0 %v401
    %463 = vmatprep.subr.bf16.mxu0 0
    %464 = vmatpush1.bf16.msra.mxu0 %v402
    %465 = vmatprep.subr.bf16.mxu0 0
    %466 = vmatpush1.bf16.msra.mxu0 %v403
    %467 = vmatprep.subr.bf16.mxu0 0
    %468 = vmatpush1.bf16.msra.mxu0 %v404
    %469 = vmatprep.subr.bf16.mxu0 0
    %470 = vmatpush1.bf16.msra.mxu0 0
    %471 = vmatprep.subr.bf16.mxu0 0
    %472 = vmatpush1.bf16.msra.mxu0 0
    %473 = vmatprep.subr.bf16.mxu0 0
    %474 = vmatpush1.bf16.msra.mxu0 0
    %475 = vmatprep.subr.bf16.mxu0 0
    %476 = vmatpush1.bf16.msra.mxu0 0
    %477 = vmatprep.subr.bf16.mxu0 0
    %478 = vmatpush1.bf16.msra.mxu0 0
    %479 = vmatprep.subr.bf16.mxu0 0
    %480 = vmatpush1.bf16.msra.mxu0 0
    %481 = vmatprep.subr.bf16.mxu0 0
    %482 = vmatpush1.bf16.msra.mxu0 0
    %483 = vmatprep.subr.bf16.mxu0 0
    %484 = vmatpush1.bf16.msra.mxu0 0
    %485 = vmatprep.mubr.bf16.mxu0 0
    %486 = vmatmul.mubr.bf16.gmra.mrb[0].mxu0 %v437
    %v487 = vpop.f32.mrb[0].mxu0
    %v488 = vadd.f32 %v321, %v487
    %v489 = vpop.f32.mrb[0].mxu0
    %v490 = vpop.f32.mrb[0].mxu0
    %v491 = vadd.f32 %v325, %v490
    %v492 = vpop.f32.mrb[0].mxu0
    %493 = vmatprep.mubr.bf16.mxu0 0
    %494 = vmatmul.mubr.bf16.gmra.mrb[0].mxu0 %v438
    %v495 = vpop.f32.mrb[0].mxu0
    %v496 = vadd.f32 %v331, %v495
    %v497 = vpop.f32.mrb[0].mxu0
    %v498 = vpop.f32.mrb[0].mxu0
    %v499 = vadd.f32 %v335, %v498
    %v500 = vpop.f32.mrb[0].mxu0
    %501 = vmatprep.mubr.bf16.mxu0 0
    %502 = vmatmul.mubr.bf16.gmra.mrb[0].mxu0 %v439
    %v503 = vpop.f32.mrb[0].mxu0
    %v504 = vadd.f32 %v341, %v503
    %v505 = vpop.f32.mrb[0].mxu0
    %v506 = vpop.f32.mrb[0].mxu0
    %v507 = vadd.f32 %v345, %v506
    %v508 = vpop.f32.mrb[0].mxu0
    %509 = vmatprep.mubr.bf16.mxu0 0
    %510 = vmatmul.mubr.bf16.gmra.mrb[0].mxu0 %v440
    %v511 = vpop.f32.mrb[0].mxu0
    %v512 = vadd.f32 %v351, %v511
    %v513 = vpop.f32.mrb[0].mxu0
    %v514 = vpop.f32.mrb[0].mxu0
    %v515 = vadd.f32 %v355, %v514
    %v516 = vpop.f32.mrb[0].mxu0
    %517 = vmatprep.mubr.bf16.mxu0 0
    %518 = vmatmul.mubr.bf16.gmra.mrb[0].mxu0 %v441
    %v519 = vpop.f32.mrb[0].mxu0
    %v520 = vadd.f32 %v361, %v519
    %v521 = vpop.f32.mrb[0].mxu0
    %v522 = vpop.f32.mrb[0].mxu0
    %v523 = vadd.f32 %v365, %v522
    %v524 = vpop.f32.mrb[0].mxu0
    %525 = vmatprep.mubr.bf16.mxu0 0
    %526 = vmatmul.mubr.bf16.gmra.mrb[0].mxu0 %v442
    %v527 = vpop.f32.mrb[0].mxu0
    %v528 = vadd.f32 %v371, %v527
    %v529 = vpop.f32.mrb[0].mxu0
    %v530 = vpop.f32.mrb[0].mxu0
    %v531 = vadd.f32 %v375, %v530
    %v532 = vpop.f32.mrb[0].mxu0
    %533 = vmatprep.mubr.bf16.mxu0 0
    %534 = vmatmul.mubr.bf16.gmra.mrb[0].mxu0 %v443
    %v535 = vpop.f32.mrb[0].mxu0
    %v536 = vadd.f32 %v381, %v535
    %v537 = vpop.f32.mrb[0].mxu0
    %v538 = vpop.f32.mrb[0].mxu0
    %v539 = vadd.f32 %v385, %v538
    %v540 = vpop.f32.mrb[0].mxu0
    %541 = vmatprep.mubr.bf16.mxu0 0
    %542 = vmatmul.mubr.bf16.gmra.mrb[0].mxu0 %v444
    %v543 = vpop.f32.mrb[0].mxu0
    %v544 = vadd.f32 %v391, %v543
    %v545 = vpop.f32.mrb[0].mxu0
    %v546 = vpop.f32.mrb[0].mxu0
    %v547 = vadd.f32 %v395, %v546
    %v548 = vpop.f32.mrb[0].mxu0
    %549 = vdwg.mxu0
    %v550 = vld [vmem:[#allocation10] sm:$0xf]
    %v551 = vld [vmem:[#allocation10 + $0x4] sm:$0xf]
    %v552 = vld [vmem:[#allocation10 + $0x8] sm:$0xf]
    %v553 = vld [vmem:[#allocation10 + $0xc] sm:$0xf]
    %v554 = vld [vmem:[#allocation10 + $0x10] sm:$0xf]
    %v555 = vld [vmem:[#allocation10 + $0x14] sm:$0xf]
    %v556 = vld [vmem:[#allocation10 + $0x18] sm:$0xf]
    %v557 = vld [vmem:[#allocation10 + $0x1c] sm:$0xf]
    %v558 = vld [vmem:[#allocation10 + $0x20] sm:$0xf]
    %v559 = vld [vmem:[#allocation10 + $0x24] sm:$0xf]
    %v560 = vld [vmem:[#allocation10 + $0x28] sm:$0xf]
    %v561 = vld [vmem:[#allocation10 + $0x2c] sm:$0xf]
    %v562 = vld [vmem:[#allocation10 + $0x30] sm:$0xf]
    %v563 = vld [vmem:[#allocation10 + $0x34] sm:$0xf]
    %v564 = vld [vmem:[#allocation10 + $0x38] sm:$0xf]
    %v565 = vld [vmem:[#allocation10 + $0x3c] sm:$0xf]
    %v566 = vld [vmem:[%s7] sm:$0x1]
    %v567 = vpack.c.bf16 %v491, %v488
    %v568 = vpack.c.bf16 %v499, %v496
    %v569 = vpack.c.bf16 %v507, %v504
    %v570 = vpack.c.bf16 %v515, %v512
    %v571 = vpack.c.bf16 %v523, %v520
    %v572 = vpack.c.bf16 %v531, %v528
    %v573 = vpack.c.bf16 %v539, %v536
    %v574 = vpack.c.bf16 %v547, %v544
    %v576 = vlaneseq
    %v577 = vshrl.u32 %v576, 7
    %v578 = vsub.s32 0, %v577
    %v579 = vrot.slane %v566, %v578
    %v597 = vunpack.c.l.b16 %v550
    %v598 = vunpack.c.l.b16 %v551
    %v599 = vunpack.c.l.b16 %v552
    %v600 = vunpack.c.l.b16 %v553
    %v601 = vunpack.c.l.b16 %v554
    %v602 = vunpack.c.l.b16 %v555
    %v603 = vunpack.c.l.b16 %v556
    %v604 = vunpack.c.l.b16 %v557
    %v605 = vunpack.c.l.b16 %v558
    %v606 = vunpack.c.l.b16 %v559
    %v607 = vunpack.c.l.b16 %v560
    %v608 = vunpack.c.l.b16 %v561
    %v609 = vunpack.c.l.b16 %v562
    %v610 = vunpack.c.l.b16 %v563
    %v611 = vunpack.c.l.b16 %v564
    %v612 = vunpack.c.l.b16 %v565
    %v613 = vpack.c.b16 %v598, %v597
    %v614 = vpack.c.b16 %v600, %v599
    %v615 = vpack.c.b16 %v602, %v601
    %v616 = vpack.c.b16 %v604, %v603
    %v617 = vpack.c.b16 %v606, %v605
    %v618 = vpack.c.b16 %v608, %v607
    %v619 = vpack.c.b16 %v610, %v609
    %v620 = vpack.c.b16 %v612, %v611
    %629 = vmatprep.subr.bf16.mxu0 0
    %630 = vmatpush1.bf16.msra.mxu0 %v613
    %631 = vmatprep.subr.bf16.mxu0 0
    %632 = vmatpush1.bf16.msra.mxu0 %v614
    %633 = vmatprep.subr.bf16.mxu0 0
    %634 = vmatpush1.bf16.msra.mxu0 %v615
    %635 = vmatprep.subr.bf16.mxu0 0
    %636 = vmatpush1.bf16.msra.mxu0 %v616
    %637 = vmatprep.subr.bf16.mxu0 0
    %638 = vmatpush1.bf16.msra.mxu0 %v617
    %639 = vmatprep.subr.bf16.mxu0 0
    %640 = vmatpush1.bf16.msra.mxu0 %v618
    %641 = vmatprep.subr.bf16.mxu0 0
    %642 = vmatpush1.bf16.msra.mxu0 %v619
    %643 = vmatprep.subr.bf16.mxu0 0
    %644 = vmatpush1.bf16.msra.mxu0 %v620
    %645 = vmatprep.subr.bf16.mxu0 0
    %646 = vmatpush1.bf16.msra.mxu0 0
    %647 = vmatprep.subr.bf16.mxu0 0
    %648 = vmatpush1.bf16.msra.mxu0 0
    %649 = vmatprep.subr.bf16.mxu0 0
    %650 = vmatpush1.bf16.msra.mxu0 0
    %651 = vmatprep.subr.bf16.mxu0 0
    %652 = vmatpush1.bf16.msra.mxu0 0
    %653 = vmatprep.subr.bf16.mxu0 0
    %654 = vmatpush1.bf16.msra.mxu0 0
    %655 = vmatprep.subr.bf16.mxu0 0
    %656 = vmatpush1.bf16.msra.mxu0 0
    %657 = vmatprep.subr.bf16.mxu0 0
    %658 = vmatpush1.bf16.msra.mxu0 0
    %659 = vmatprep.subr.bf16.mxu0 0
    %660 = vmatpush1.bf16.msra.mxu0 0
    %661 = vmatprep.mubr.bf16.mxu0 0
    %662 = vmatmul.mubr.bf16.gmra.mrb[0].mxu0 %v567
    %v663 = vpop.f32.mrb[0].mxu0
    %v664 = vadd.f32 %v579, %v663
    %v665 = vpop.f32.mrb[0].mxu0
    %v666 = vpop.f32.mrb[0].mxu0
    %v667 = vadd.f32 %v579, %v666
    %v668 = vpop.f32.mrb[0].mxu0
    %669 = vmatprep.mubr.bf16.mxu0 0
    %670 = vmatmul.mubr.bf16.gmra.mrb[0].mxu0 %v568
    %v671 = vpop.f32.mrb[0].mxu0
    %v672 = vadd.f32 %v579, %v671
    %v673 = vpop.f32.mrb[0].mxu0
    %v674 = vpop.f32.mrb[0].mxu0
    %v675 = vadd.f32 %v579, %v674
    %v676 = vpop.f32.mrb[0].mxu0
    %677 = vmatprep.mubr.bf16.mxu0 0
    %678 = vmatmul.mubr.bf16.gmra.mrb[0].mxu0 %v569
    %v679 = vpop.f32.mrb[0].mxu0
    %v680 = vadd.f32 %v579, %v679
    %v681 = vpop.f32.mrb[0].mxu0
    %v682 = vpop.f32.mrb[0].mxu0
    %v683 = vadd.f32 %v579, %v682
    %v684 = vpop.f32.mrb[0].mxu0
    %685 = vmatprep.mubr.bf16.mxu0 0
    %686 = vmatmul.mubr.bf16.gmra.mrb[0].mxu0 %v570
    %v687 = vpop.f32.mrb[0].mxu0
    %v688 = vadd.f32 %v579, %v687
    %v689 = vpop.f32.mrb[0].mxu0
    %v690 = vpop.f32.mrb[0].mxu0
    %v691 = vadd.f32 %v579, %v690
    %v692 = vpop.f32.mrb[0].mxu0
    %693 = vmatprep.mubr.bf16.mxu0 0
    %694 = vmatmul.mubr.bf16.gmra.mrb[0].mxu0 %v571
    %v695 = vpop.f32.mrb[0].mxu0
    %v696 = vadd.f32 %v579, %v695
    %v697 = vpop.f32.mrb[0].mxu0
    %v698 = vpop.f32.mrb[0].mxu0
    %v699 = vadd.f32 %v579, %v698
    %v700 = vpop.f32.mrb[0].mxu0
    %701 = vmatprep.mubr.bf16.mxu0 0
    %702 = vmatmul.mubr.bf16.gmra.mrb[0].mxu0 %v572
    %v703 = vpop.f32.mrb[0].mxu0
    %v704 = vadd.f32 %v579, %v703
    %v705 = vpop.f32.mrb[0].mxu0
    %v706 = vpop.f32.mrb[0].mxu0
    %v707 = vadd.f32 %v579, %v706
    %v708 = vpop.f32.mrb[0].mxu0
    %709 = vmatprep.mubr.bf16.mxu0 0
    %710 = vmatmul.mubr.bf16.gmra.mrb[0].mxu0 %v573
    %v711 = vpop.f32.mrb[0].mxu0
    %v712 = vadd.f32 %v579, %v711
    %v713 = vpop.f32.mrb[0].mxu0
    %v714 = vpop.f32.mrb[0].mxu0
    %v715 = vadd.f32 %v579, %v714
    %v716 = vpop.f32.mrb[0].mxu0
    %717 = vmatprep.mubr.bf16.mxu0 0
    %718 = vmatmul.mubr.bf16.gmra.mrb[0].mxu0 %v574
    %v719 = vpop.f32.mrb[0].mxu0
    %v720 = vadd.f32 %v579, %v719
    %v721 = vpop.f32.mrb[0].mxu0
    %v722 = vpop.f32.mrb[0].mxu0
    %v723 = vadd.f32 %v579, %v722
    %v724 = vpop.f32.mrb[0].mxu0
    %725 = vdwg.mxu0
    %v726 = vpack.c.bf16 %v667, %v664
    %v727 = vpack.c.bf16 %v675, %v672
    %v728 = vpack.c.bf16 %v683, %v680
    %v729 = vpack.c.bf16 %v691, %v688
    %v730 = vpack.c.bf16 %v699, %v696
    %v731 = vpack.c.bf16 %v707, %v704
    %v732 = vpack.c.bf16 %v715, %v712
    %v733 = vpack.c.bf16 %v723, %v720
    %734 = vmatprep.subr.bf16.mxu0 0
    %735 = vmatpush1.bf16.msra.mxu0 %v726
    %736 = vmatprep.subr.bf16.mxu0 0
    %737 = vmatpush1.bf16.msra.mxu0 %v727
    %738 = vmatprep.subr.bf16.mxu0 0
    %739 = vmatpush1.bf16.msra.mxu0 %v728
    %740 = vmatprep.subr.bf16.mxu0 0
    %741 = vmatpush1.bf16.msra.mxu0 %v729
    %742 = vmatprep.subr.bf16.mxu0 0
    %743 = vmatpush1.bf16.msra.mxu0 %v730
    %744 = vmatprep.subr.bf16.mxu0 0
    %745 = vmatpush1.bf16.msra.mxu0 %v731
    %746 = vmatprep.subr.bf16.mxu0 0
    %747 = vmatpush1.bf16.msra.mxu0 %v732
    %748 = vmatprep.subr.bf16.mxu0 0
    %749 = vmatpush1.bf16.msra.mxu0 %v733
    %750 = vmatprep.subr.bf16.mxu0 0
    %751 = vmatpush1.bf16.msra.mxu0 0
    %752 = vmatprep.subr.bf16.mxu0 0
    %753 = vmatpush1.bf16.msra.mxu0 0
    %754 = vmatprep.subr.bf16.mxu0 0
    %755 = vmatpush1.bf16.msra.mxu0 0
    %756 = vmatprep.subr.bf16.mxu0 0
    %757 = vmatpush1.bf16.msra.mxu0 0
    %758 = vmatprep.subr.bf16.mxu0 0
    %759 = vmatpush1.bf16.msra.mxu0 0
    %760 = vmatprep.subr.bf16.mxu0 0
    %761 = vmatpush1.bf16.msra.mxu0 0
    %762 = vmatprep.subr.bf16.mxu0 0
    %763 = vmatpush1.bf16.msra.mxu0 0
    %764 = vmatprep.subr.bf16.mxu0 0
    %765 = vmatpush1.bf16.msra.mxu0 0
    %766 = vmatprep.mubr.bf16.mxu0 0
    %767 = vmatmul.mubr.bf16.gmra.mrb[0].mxu0 %v437
    %v768 = vpop.f32.mrb[0].mxu0
    %v769 = vadd.f32 %v488, %v768
    %v770 = vpop.f32.mrb[0].mxu0
    %v771 = vpop.f32.mrb[0].mxu0
    %v772 = vadd.f32 %v491, %v771
    %v773 = vpop.f32.mrb[0].mxu0
    %774 = vmatprep.mubr.bf16.mxu0 0
    %775 = vmatmul.mubr.bf16.gmra.mrb[0].mxu0 %v438
    %v776 = vpop.f32.mrb[0].mxu0
    %v777 = vadd.f32 %v496, %v776
    %v778 = vpop.f32.mrb[0].mxu0
    %v779 = vpop.f32.mrb[0].mxu0
    %v780 = vadd.f32 %v499, %v779
    %v781 = vpop.f32.mrb[0].mxu0
    %782 = vmatprep.mubr.bf16.mxu0 0
    %783 = vmatmul.mubr.bf16.gmra.mrb[0].mxu0 %v439
    %v784 = vpop.f32.mrb[0].mxu0
    %v785 = vadd.f32 %v504, %v784
    %v786 = vpop.f32.mrb[0].mxu0
    %v787 = vpop.f32.mrb[0].mxu0
    %v788 = vadd.f32 %v507, %v787
    %v789 = vpop.f32.mrb[0].mxu0
    %790 = vmatprep.mubr.bf16.mxu0 0
    %791 = vmatmul.mubr.bf16.gmra.mrb[0].mxu0 %v440
    %v792 = vpop.f32.mrb[0].mxu0
    %v793 = vadd.f32 %v512, %v792
    %v794 = vpop.f32.mrb[0].mxu0
    %v795 = vpop.f32.mrb[0].mxu0
    %v796 = vadd.f32 %v515, %v795
    %v797 = vpop.f32.mrb[0].mxu0
    %798 = vmatprep.mubr.bf16.mxu0 0
    %799 = vmatmul.mubr.bf16.gmra.mrb[0].mxu0 %v441
    %v800 = vpop.f32.mrb[0].mxu0
    %v801 = vadd.f32 %v520, %v800
    %v802 = vpop.f32.mrb[0].mxu0
    %v803 = vpop.f32.mrb[0].mxu0
    %v804 = vadd.f32 %v523, %v803
    %v805 = vpop.f32.mrb[0].mxu0
    %806 = vmatprep.mubr.bf16.mxu0 0
    %807 = vmatmul.mubr.bf16.gmra.mrb[0].mxu0 %v442
    %v808 = vpop.f32.mrb[0].mxu0
    %v809 = vadd.f32 %v528, %v808
    %v810 = vpop.f32.mrb[0].mxu0
    %v811 = vpop.f32.mrb[0].mxu0
    %v812 = vadd.f32 %v531, %v811
    %v813 = vpop.f32.mrb[0].mxu0
    %814 = vmatprep.mubr.bf16.mxu0 0
    %815 = vmatmul.mubr.bf16.gmra.mrb[0].mxu0 %v443
    %v816 = vpop.f32.mrb[0].mxu0
    %v817 = vadd.f32 %v536, %v816
    %v818 = vpop.f32.mrb[0].mxu0
    %v819 = vpop.f32.mrb[0].mxu0
    %v820 = vadd.f32 %v539, %v819
    %v821 = vpop.f32.mrb[0].mxu0
    %822 = vmatprep.mubr.bf16.mxu0 0
    %823 = vmatmul.mubr.bf16.gmra.mrb[0].mxu0 %v444
    %v824 = vpop.f32.mrb[0].mxu0
    %v825 = vadd.f32 %v544, %v824
    %v826 = vpop.f32.mrb[0].mxu0
    %v827 = vpop.f32.mrb[0].mxu0
    %v828 = vadd.f32 %v547, %v827
    %v829 = vpop.f32.mrb[0].mxu0
    %830 = vdwg.mxu0
    %v831 = vld [vmem:[#allocation11] sm:$0xff]
    %v832 = vld [vmem:[#allocation11 + $0x8] sm:$0xff]
    %v833 = vld [vmem:[#allocation11 + $0x10] sm:$0xff]
    %v834 = vld [vmem:[#allocation11 + $0x18] sm:$0xff]
    %v835 = vld [vmem:[#allocation11 + $0x20] sm:$0xff]
    %v836 = vld [vmem:[#allocation11 + $0x28] sm:$0xff]
    %v837 = vld [vmem:[#allocation11 + $0x30] sm:$0xff]
    %v838 = vld [vmem:[#allocation11 + $0x38] sm:$0xff]
    %v839 = vld [vmem:[#allocation11 + $0x40] sm:$0xff]
    %v840 = vld [vmem:[#allocation11 + $0x48] sm:$0xff]
    %v841 = vld [vmem:[#allocation11 + $0x50] sm:$0xff]
    %v842 = vld [vmem:[#allocation11 + $0x58] sm:$0xff]
    %v843 = vld [vmem:[#allocation11 + $0x60] sm:$0xff]
    %v844 = vld [vmem:[#allocation11 + $0x68] sm:$0xff]
    %v845 = vld [vmem:[#allocation11 + $0x70] sm:$0xff]
    %v846 = vld [vmem:[#allocation11 + $0x78] sm:$0xff]
    %v847 = vld [vmem:[%s9] sm:$0x3]
    %v848 = vpack.c.bf16 %v772, %v769
    %v849 = vpack.c.bf16 %v780, %v777
    %v850 = vpack.c.bf16 %v788, %v785
    %v851 = vpack.c.bf16 %v796, %v793
    %v852 = vpack.c.bf16 %v804, %v801
    %v853 = vpack.c.bf16 %v812, %v809
    %v854 = vpack.c.bf16 %v820, %v817
    %v855 = vpack.c.bf16 %v828, %v825
    %v857 = vlaneseq
    %v858 = vshrl.u32 %v857, 7
    %v859 = vsub.s32 0, %v858
    %v860 = vrot.slane %v847, %v859
    %v861 = vlaneseq
    %v862 = vshrl.u32 %v861, 7
    %v863 = vsub.s32 1, %v862
    %v864 = vrot.slane %v847, %v863
    %v883 = vunpack.c.l.b16 %v831
    %v884 = vunpack.c.h.b16 %v831
    %v885 = vunpack.c.l.b16 %v832
    %v886 = vunpack.c.h.b16 %v832
    %v887 = vunpack.c.l.b16 %v833
    %v888 = vunpack.c.h.b16 %v833
    %v889 = vunpack.c.l.b16 %v834
    %v890 = vunpack.c.h.b16 %v834
    %v891 = vunpack.c.l.b16 %v835
    %v892 = vunpack.c.h.b16 %v835
    %v893 = vunpack.c.l.b16 %v836
    %v894 = vunpack.c.h.b16 %v836
    %v895 = vunpack.c.l.b16 %v837
    %v896 = vunpack.c.h.b16 %v837
    %v897 = vunpack.c.l.b16 %v838
    %v898 = vunpack.c.h.b16 %v838
    %v899 = vunpack.c.l.b16 %v839
    %v900 = vunpack.c.h.b16 %v839
    %v901 = vunpack.c.l.b16 %v840
    %v902 = vunpack.c.h.b16 %v840
    %v903 = vunpack.c.l.b16 %v841
    %v904 = vunpack.c.h.b16 %v841
    %v905 = vunpack.c.l.b16 %v842
    %v906 = vunpack.c.h.b16 %v842
    %v907 = vunpack.c.l.b16 %v843
    %v908 = vunpack.c.h.b16 %v843
    %v909 = vunpack.c.l.b16 %v844
    %v910 = vunpack.c.h.b16 %v844
    %v911 = vunpack.c.l.b16 %v845
    %v912 = vunpack.c.h.b16 %v845
    %v913 = vunpack.c.l.b16 %v846
    %v914 = vunpack.c.h.b16 %v846
    %v915 = vpack.c.b16 %v885, %v883
    %v916 = vpack.c.b16 %v886, %v884
    %v917 = vpack.c.b16 %v889, %v887
    %v918 = vpack.c.b16 %v890, %v888
    %v919 = vpack.c.b16 %v893, %v891
    %v920 = vpack.c.b16 %v894, %v892
    %v921 = vpack.c.b16 %v897, %v895
    %v922 = vpack.c.b16 %v898, %v896
    %v923 = vpack.c.b16 %v901, %v899
    %v924 = vpack.c.b16 %v902, %v900
    %v925 = vpack.c.b16 %v905, %v903
    %v926 = vpack.c.b16 %v906, %v904
    %v927 = vpack.c.b16 %v909, %v907
    %v928 = vpack.c.b16 %v910, %v908
    %v929 = vpack.c.b16 %v913, %v911
    %v930 = vpack.c.b16 %v914, %v912
    %947 = vmatprep.subr.bf16.mxu0 %v916
    %948 = vmatpush1.bf16.msra.mxu0 %v915
    %949 = vmatprep.subr.bf16.mxu0 %v918
    %950 = vmatpush1.bf16.msra.mxu0 %v917
    %951 = vmatprep.subr.bf16.mxu0 %v920
    %952 = vmatpush1.bf16.msra.mxu0 %v919
    %953 = vmatprep.subr.bf16.mxu0 %v922
    %954 = vmatpush1.bf16.msra.mxu0 %v921
    %955 = vmatprep.subr.bf16.mxu0 %v924
    %956 = vmatpush1.bf16.msra.mxu0 %v923
    %957 = vmatprep.subr.bf16.mxu0 %v926
    %958 = vmatpush1.bf16.msra.mxu0 %v925
    %959 = vmatprep.subr.bf16.mxu0 %v928
    %960 = vmatpush1.bf16.msra.mxu0 %v927
    %961 = vmatprep.subr.bf16.mxu0 %v930
    %962 = vmatpush1.bf16.msra.mxu0 %v929
    %963 = vmatprep.subr.bf16.mxu0 0
    %964 = vmatpush1.bf16.msra.mxu0 0
    %965 = vmatprep.subr.bf16.mxu0 0
    %966 = vmatpush1.bf16.msra.mxu0 0
    %967 = vmatprep.subr.bf16.mxu0 0
    %968 = vmatpush1.bf16.msra.mxu0 0
    %969 = vmatprep.subr.bf16.mxu0 0
    %970 = vmatpush1.bf16.msra.mxu0 0
    %971 = vmatprep.subr.bf16.mxu0 0
    %972 = vmatpush1.bf16.msra.mxu0 0
    %973 = vmatprep.subr.bf16.mxu0 0
    %974 = vmatpush1.bf16.msra.mxu0 0
    %975 = vmatprep.subr.bf16.mxu0 0
    %976 = vmatpush1.bf16.msra.mxu0 0
    %977 = vmatprep.subr.bf16.mxu0 0
    %978 = vmatpush1.bf16.msra.mxu0 0
    %979 = vmatprep.mubr.bf16.mxu0 0
    %980 = vmatmul.mubr.bf16.gmra.mrb[0].mxu0 %v848
    %v981 = vpop.f32.mrb[0].mxu0
    %v982 = vadd.f32 %v860, %v981
    %v983 = vpop.f32.mrb[0].mxu0
    %v984 = vadd.f32 %v864, %v983
    %v985 = vpop.f32.mrb[0].mxu0
    %v986 = vadd.f32 %v860, %v985
    %v987 = vpop.f32.mrb[0].mxu0
    %v988 = vadd.f32 %v864, %v987
    %989 = vmatprep.mubr.bf16.mxu0 0
    %990 = vmatmul.mubr.bf16.gmra.mrb[0].mxu0 %v849
    %v991 = vpop.f32.mrb[0].mxu0
    %v992 = vadd.f32 %v860, %v991
    %v993 = vpop.f32.mrb[0].mxu0
    %v994 = vadd.f32 %v864, %v993
    %v995 = vpop.f32.mrb[0].mxu0
    %v996 = vadd.f32 %v860, %v995
    %v997 = vpop.f32.mrb[0].mxu0
    %v998 = vadd.f32 %v864, %v997
    %999 = vmatprep.mubr.bf16.mxu0 0
    %1000 = vmatmul.mubr.bf16.gmra.mrb[0].mxu0 %v850
    %v1001 = vpop.f32.mrb[0].mxu0
    %v1002 = vadd.f32 %v860, %v1001
    %v1003 = vpop.f32.mrb[0].mxu0
    %v1004 = vadd.f32 %v864, %v1003
    %v1005 = vpop.f32.mrb[0].mxu0
    %v1006 = vadd.f32 %v860, %v1005
    %v1007 = vpop.f32.mrb[0].mxu0
    %v1008 = vadd.f32 %v864, %v1007
    %1009 = vmatprep.mubr.bf16.mxu0 0
    %1010 = vmatmul.mubr.bf16.gmra.mrb[0].mxu0 %v851
    %v1011 = vpop.f32.mrb[0].mxu0
    %v1012 = vadd.f32 %v860, %v1011
    %v1013 = vpop.f32.mrb[0].mxu0
    %v1014 = vadd.f32 %v864, %v1013
    %v1015 = vpop.f32.mrb[0].mxu0
    %v1016 = vadd.f32 %v860, %v1015
    %v1017 = vpop.f32.mrb[0].mxu0
    %v1018 = vadd.f32 %v864, %v1017
    %1019 = vmatprep.mubr.bf16.mxu0 0
    %1020 = vmatmul.mubr.bf16.gmra.mrb[0].mxu0 %v852
    %v1021 = vpop.f32.mrb[0].mxu0
    %v1022 = vadd.f32 %v860, %v1021
    %v1023 = vpop.f32.mrb[0].mxu0
    %v1024 = vadd.f32 %v864, %v1023
    %v1025 = vpop.f32.mrb[0].mxu0
    %v1026 = vadd.f32 %v860, %v1025
    %v1027 = vpop.f32.mrb[0].mxu0
    %v1028 = vadd.f32 %v864, %v1027
    %1029 = vmatprep.mubr.bf16.mxu0 0
    %1030 = vmatmul.mubr.bf16.gmra.mrb[0].mxu0 %v853
    %v1031 = vpop.f32.mrb[0].mxu0
    %v1032 = vadd.f32 %v860, %v1031
    %v1033 = vpop.f32.mrb[0].mxu0
    %v1034 = vadd.f32 %v864, %v1033
    %v1035 = vpop.f32.mrb[0].mxu0
    %v1036 = vadd.f32 %v860, %v1035
    %v1037 = vpop.f32.mrb[0].mxu0
    %v1038 = vadd.f32 %v864, %v1037
    %1039 = vmatprep.mubr.bf16.mxu0 0
    %1040 = vmatmul.mubr.bf16.gmra.mrb[0].mxu0 %v854
    %v1041 = vpop.f32.mrb[0].mxu0
    %v1042 = vadd.f32 %v860, %v1041
    %v1043 = vpop.f32.mrb[0].mxu0
    %v1044 = vadd.f32 %v864, %v1043
    %v1045 = vpop.f32.mrb[0].mxu0
    %v1046 = vadd.f32 %v860, %v1045
    %v1047 = vpop.f32.mrb[0].mxu0
    %v1048 = vadd.f32 %v864, %v1047
    %1049 = vmatprep.mubr.bf16.mxu0 0
    %1050 = vmatmul.mubr.bf16.gmra.mrb[0].mxu0 %v855
    %v1051 = vpop.f32.mrb[0].mxu0
    %v1052 = vadd.f32 %v860, %v1051
    %v1053 = vpop.f32.mrb[0].mxu0
    %v1054 = vadd.f32 %v864, %v1053
    %v1055 = vpop.f32.mrb[0].mxu0
    %v1056 = vadd.f32 %v860, %v1055
    %v1057 = vpop.f32.mrb[0].mxu0
    %v1058 = vadd.f32 %v864, %v1057
    %1059 = vdwg.mxu0
    %v1060 = vpack.c.bf16 %v986, %v982
    %v1061 = vpack.c.bf16 %v996, %v992
    %v1062 = vpack.c.bf16 %v1006, %v1002
    %v1063 = vpack.c.bf16 %v1016, %v1012
    %v1064 = vpack.c.bf16 %v1026, %v1022
    %v1065 = vpack.c.bf16 %v1036, %v1032
    %v1066 = vpack.c.bf16 %v1046, %v1042
    %v1067 = vpack.c.bf16 %v1056, %v1052
    %1068 = vmatprep.subr.bf16.mxu0 0
    %1069 = vmatpush1.bf16.msra.mxu0 %v1060
    %1070 = vmatprep.subr.bf16.mxu0 0
    %1071 = vmatpush1.bf16.msra.mxu0 %v1061
    %1072 = vmatprep.subr.bf16.mxu0 0
    %1073 = vmatpush1.bf16.msra.mxu0 %v1062
    %1074 = vmatprep.subr.bf16.mxu0 0
    %1075 = vmatpush1.bf16.msra.mxu0 %v1063
    %1076 = vmatprep.subr.bf16.mxu0 0
    %1077 = vmatpush1.bf16.msra.mxu0 %v1064
    %1078 = vmatprep.subr.bf16.mxu0 0
    %1079 = vmatpush1.bf16.msra.mxu0 %v1065
    %1080 = vmatprep.subr.bf16.mxu0 0
    %1081 = vmatpush1.bf16.msra.mxu0 %v1066
    %1082 = vmatprep.subr.bf16.mxu0 0
    %1083 = vmatpush1.bf16.msra.mxu0 %v1067
    %1084 = vmatprep.subr.bf16.mxu0 0
    %1085 = vmatpush1.bf16.msra.mxu0 0
    %1086 = vmatprep.subr.bf16.mxu0 0
    %1087 = vmatpush1.bf16.msra.mxu0 0
    %1088 = vmatprep.subr.bf16.mxu0 0
    %1089 = vmatpush1.bf16.msra.mxu0 0
    %1090 = vmatprep.subr.bf16.mxu0 0
    %1091 = vmatpush1.bf16.msra.mxu0 0
    %1092 = vmatprep.subr.bf16.mxu0 0
    %1093 = vmatpush1.bf16.msra.mxu0 0
    %1094 = vmatprep.subr.bf16.mxu0 0
    %1095 = vmatpush1.bf16.msra.mxu0 0
    %1096 = vmatprep.subr.bf16.mxu0 0
    %1097 = vmatpush1.bf16.msra.mxu0 0
    %1098 = vmatprep.subr.bf16.mxu0 0
    %1099 = vmatpush1.bf16.msra.mxu0 0
    %1100 = vmatprep.mubr.bf16.mxu0 0
    %1101 = vmatmul.mubr.bf16.gmra.mrb[0].mxu0 %v437
    %v1102 = vpop.f32.mrb[0].mxu0
    %v1103 = vadd.f32 %v984, %v1102
    %v1104 = vpop.f32.mrb[0].mxu0
    %v1105 = vpop.f32.mrb[0].mxu0
    %v1106 = vadd.f32 %v988, %v1105
    %v1107 = vpop.f32.mrb[0].mxu0
    %1108 = vmatprep.mubr.bf16.mxu0 0
    %1109 = vmatmul.mubr.bf16.gmra.mrb[0].mxu0 %v438
    %v1110 = vpop.f32.mrb[0].mxu0
    %v1111 = vadd.f32 %v994, %v1110
    %v1112 = vpop.f32.mrb[0].mxu0
    %v1113 = vpop.f32.mrb[0].mxu0
    %v1114 = vadd.f32 %v998, %v1113
    %v1115 = vpop.f32.mrb[0].mxu0
    %1116 = vmatprep.mubr.bf16.mxu0 0
    %1117 = vmatmul.mubr.bf16.gmra.mrb[0].mxu0 %v439
    %v1118 = vpop.f32.mrb[0].mxu0
    %v1119 = vadd.f32 %v1004, %v1118
    %v1120 = vpop.f32.mrb[0].mxu0
    %v1121 = vpop.f32.mrb[0].mxu0
    %v1122 = vadd.f32 %v1008, %v1121
    %v1123 = vpop.f32.mrb[0].mxu0
    %1124 = vmatprep.mubr.bf16.mxu0 0
    %1125 = vmatmul.mubr.bf16.gmra.mrb[0].mxu0 %v440
    %v1126 = vpop.f32.mrb[0].mxu0
    %v1127 = vadd.f32 %v1014, %v1126
    %v1128 = vpop.f32.mrb[0].mxu0
    %v1129 = vpop.f32.mrb[0].mxu0
    %v1130 = vadd.f32 %v1018, %v1129
    %v1131 = vpop.f32.mrb[0].mxu0
    %1132 = vmatprep.mubr.bf16.mxu0 0
    %1133 = vmatmul.mubr.bf16.gmra.mrb[0].mxu0 %v441
    %v1134 = vpop.f32.mrb[0].mxu0
    %v1135 = vadd.f32 %v1024, %v1134
    %v1136 = vpop.f32.mrb[0].mxu0
    %v1137 = vpop.f32.mrb[0].mxu0
    %v1138 = vadd.f32 %v1028, %v1137
    %v1139 = vpop.f32.mrb[0].mxu0
    %1140 = vmatprep.mubr.bf16.mxu0 0
    %1141 = vmatmul.mubr.bf16.gmra.mrb[0].mxu0 %v442
    %v1142 = vpop.f32.mrb[0].mxu0
    %v1143 = vadd.f32 %v1034, %v1142
    %v1144 = vpop.f32.mrb[0].mxu0
    %v1145 = vpop.f32.mrb[0].mxu0
    %v1146 = vadd.f32 %v1038, %v1145
    %v1147 = vpop.f32.mrb[0].mxu0
    %1148 = vmatprep.mubr.bf16.mxu0 0
    %1149 = vmatmul.mubr.bf16.gmra.mrb[0].mxu0 %v443
    %v1150 = vpop.f32.mrb[0].mxu0
    %v1151 = vadd.f32 %v1044, %v1150
    %v1152 = vpop.f32.mrb[0].mxu0
    %v1153 = vpop.f32.mrb[0].mxu0
    %v1154 = vadd.f32 %v1048, %v1153
    %v1155 = vpop.f32.mrb[0].mxu0
    %1156 = vmatprep.mubr.bf16.mxu0 0
    %1157 = vmatmul.mubr.bf16.gmra.mrb[0].mxu0 %v444
    %v1158 = vpop.f32.mrb[0].mxu0
    %v1159 = vadd.f32 %v1054, %v1158
    %v1160 = vpop.f32.mrb[0].mxu0
    %v1161 = vpop.f32.mrb[0].mxu0
    %v1162 = vadd.f32 %v1058, %v1161
    %v1163 = vpop.f32.mrb[0].mxu0
    %1164 = vdwg.mxu0
    %v1165 = vld [vmem:[#allocation7] sm:$0xf]
    %v1166 = vpack.c.bf16 %v1106, %v1103
    %v1167 = vpack.c.bf16 %v1114, %v1111
    %v1168 = vpack.c.bf16 %v1122, %v1119
    %v1169 = vpack.c.bf16 %v1130, %v1127
    %v1170 = vpack.c.bf16 %v1138, %v1135
    %v1171 = vpack.c.bf16 %v1146, %v1143
    %v1172 = vpack.c.bf16 %v1154, %v1151
    %v1173 = vpack.c.bf16 %v1162, %v1159
    %1174 = vmatprep.subr.bf16.mxu0 0
    %1175 = vmatpush1.bf16.msra.mxu0 %v1166
    %1176 = vmatprep.subr.bf16.mxu0 0
    %1177 = vmatpush1.bf16.msra.mxu0 %v1167
    %1178 = vmatprep.subr.bf16.mxu0 0
    %1179 = vmatpush1.bf16.msra.mxu0 %v1168
    %1180 = vmatprep.subr.bf16.mxu0 0
    %1181 = vmatpush1.bf16.msra.mxu0 %v1169
    %1182 = vmatprep.subr.bf16.mxu0 0
    %1183 = vmatpush1.bf16.msra.mxu0 %v1170
    %1184 = vmatprep.subr.bf16.mxu0 0
    %1185 = vmatpush1.bf16.msra.mxu0 %v1171
    %1186 = vmatprep.subr.bf16.mxu0 0
    %1187 = vmatpush1.bf16.msra.mxu0 %v1172
    %1188 = vmatprep.subr.bf16.mxu0 0
    %1189 = vmatpush1.bf16.msra.mxu0 %v1173
    %1190 = vmatprep.subr.bf16.mxu0 0
    %1191 = vmatpush1.bf16.msra.mxu0 0
    %1192 = vmatprep.subr.bf16.mxu0 0
    %1193 = vmatpush1.bf16.msra.mxu0 0
    %1194 = vmatprep.subr.bf16.mxu0 0
    %1195 = vmatpush1.bf16.msra.mxu0 0
    %1196 = vmatprep.subr.bf16.mxu0 0
    %1197 = vmatpush1.bf16.msra.mxu0 0
    %1198 = vmatprep.subr.bf16.mxu0 0
    %1199 = vmatpush1.bf16.msra.mxu0 0
    %1200 = vmatprep.subr.bf16.mxu0 0
    %1201 = vmatpush1.bf16.msra.mxu0 0
    %1202 = vmatprep.subr.bf16.mxu0 0
    %1203 = vmatpush1.bf16.msra.mxu0 0
    %1204 = vmatprep.subr.bf16.mxu0 0
    %1205 = vmatpush1.bf16.msra.mxu0 0
    %1206 = vmatprep.mubr.bf16.mxu0 0
    %1207 = vmatmul.mubr.bf16.gmra.mrb[0].mxu0 %v1165
    %v1208 = vpop.f32.mrb[0].mxu0
    %v1209 = vadd.f32 0.0, %v1208
    %v1210 = vpop.f32.mrb[0].mxu0
    %v1211 = vpop.f32.mrb[0].mxu0
    %v1212 = vpop.f32.mrb[0].mxu0
    %1213 = vdwg.mxu0
    %v1214 = vld [vmem:[%s3] sm:$0xff]
    %v1215 = vmul.f32 %v1209, %v1214
    %v1216 = vld [vmem:[#allocation13] sm:$0xff]
    %v1217 = vld [vmem:[#allocation13 + $0x8] sm:$0xff]
    %v1218 = vld [vmem:[#allocation13 + $0x10] sm:$0xff]
    %v1219 = vld [vmem:[#allocation13 + $0x18] sm:$0xff]
    %v1220 = vld [vmem:[#allocation13 + $0x20] sm:$0xff]
    %v1221 = vld [vmem:[#allocation13 + $0x28] sm:$0xff]
    %v1222 = vld [vmem:[#allocation13 + $0x30] sm:$0xff]
    %v1223 = vld [vmem:[#allocation13 + $0x38] sm:$0xff]
    %v1224 = vld [vmem:[#allocation13 + $0x40] sm:$0xff]
    %v1225 = vld [vmem:[#allocation13 + $0x48] sm:$0xff]
    %v1226 = vld [vmem:[#allocation13 + $0x50] sm:$0xff]
    %v1227 = vld [vmem:[#allocation13 + $0x58] sm:$0xff]
    %v1228 = vld [vmem:[#allocation13 + $0x60] sm:$0xff]
    %v1229 = vld [vmem:[#allocation13 + $0x68] sm:$0xff]
    %v1230 = vld [vmem:[#allocation13 + $0x70] sm:$0xff]
    %v1231 = vld [vmem:[#allocation13 + $0x78] sm:$0xff]
    %v1232 = vld [vmem:[%s11] sm:$0x1]
    %v1234 = vlaneseq
    %v1235 = vshrl.u32 %v1234, 7
    %v1236 = vsub.s32 0, %v1235
    %v1237 = vrot.slane %v1232, %v1236
    %1239 = vmatprep.subr.mxu0 0.0
    %1240 = vmatpush1.msra.mxu0 %v1216
    %1241 = vmatprep.subr.mxu0 0.0
    %1242 = vmatpush1.msra.mxu0 %v1217
    %1243 = vmatprep.subr.mxu0 0.0
    %1244 = vmatpush1.msra.mxu0 %v1218
    %1245 = vmatprep.subr.mxu0 0.0
    %1246 = vmatpush1.msra.mxu0 %v1219
    %1247 = vmatprep.subr.mxu0 0.0
    %1248 = vmatpush1.msra.mxu0 %v1220
    %1249 = vmatprep.subr.mxu0 0.0
    %1250 = vmatpush1.msra.mxu0 %v1221
    %1251 = vmatprep.subr.mxu0 0.0
    %1252 = vmatpush1.msra.mxu0 %v1222
    %1253 = vmatprep.subr.mxu0 0.0
    %1254 = vmatpush1.msra.mxu0 %v1223
    %1255 = vmatprep.subr.mxu0 0.0
    %1256 = vmatpush1.msra.mxu0 %v1224
    %1257 = vmatprep.subr.mxu0 0.0
    %1258 = vmatpush1.msra.mxu0 %v1225
    %1259 = vmatprep.subr.mxu0 0.0
    %1260 = vmatpush1.msra.mxu0 %v1226
    %1261 = vmatprep.subr.mxu0 0.0
    %1262 = vmatpush1.msra.mxu0 %v1227
    %1263 = vmatprep.subr.mxu0 0.0
    %1264 = vmatpush1.msra.mxu0 %v1228
    %1265 = vmatprep.subr.mxu0 0.0
    %1266 = vmatpush1.msra.mxu0 %v1229
    %1267 = vmatprep.subr.mxu0 0.0
    %1268 = vmatpush1.msra.mxu0 %v1230
    %1269 = vmatprep.subr.mxu0 0.0
    %1270 = vmatpush1.msra.mxu0 %v1231
    %1271 = vmatprep.subr.mxu0 0.0
    %1272 = vmatpush1.msra.mxu0 0.0
    %1273 = vmatprep.subr.mxu0 0.0
    %1274 = vmatpush1.msra.mxu0 0.0
    %1275 = vmatprep.subr.mxu0 0.0
    %1276 = vmatpush1.msra.mxu0 0.0
    %1277 = vmatprep.subr.mxu0 0.0
    %1278 = vmatpush1.msra.mxu0 0.0
    %1279 = vmatprep.subr.mxu0 0.0
    %1280 = vmatpush1.msra.mxu0 0.0
    %1281 = vmatprep.subr.mxu0 0.0
    %1282 = vmatpush1.msra.mxu0 0.0
    %1283 = vmatprep.subr.mxu0 0.0
    %1284 = vmatpush1.msra.mxu0 0.0
    %1285 = vmatprep.subr.mxu0 0.0
    %1286 = vmatpush1.msra.mxu0 0.0
    %1287 = vmatprep.subr.mxu0 0.0
    %1288 = vmatpush1.msra.mxu0 0.0
    %1289 = vmatprep.subr.mxu0 0.0
    %1290 = vmatpush1.msra.mxu0 0.0
    %1291 = vmatprep.subr.mxu0 0.0
    %1292 = vmatpush1.msra.mxu0 0.0
    %1293 = vmatprep.subr.mxu0 0.0
    %1294 = vmatpush1.msra.mxu0 0.0
    %1295 = vmatprep.subr.mxu0 0.0
    %1296 = vmatpush1.msra.mxu0 0.0
    %1297 = vmatprep.subr.mxu0 0.0
    %1298 = vmatpush1.msra.mxu0 0.0
    %1299 = vmatprep.subr.mxu0 0.0
    %1300 = vmatpush1.msra.mxu0 0.0
    %1301 = vmatprep.subr.mxu0 0.0
    %1302 = vmatpush1.msra.mxu0 0.0
    %1303 = vmatprep.mubr.f32.mxu0 0.0
    %1304 = vmatmul.mubr.f32.gmra.mrb[0].mxu0 %v1215
    %v1305 = vpop.f32.mrb[0].mxu0
    %v1306 = vadd.f32 %v1237, %v1305
    %v1307 = vpop.f32.mrb[0].mxu0
    %1308 = vdwg.mxu0
    %v1309 = vlaneseq
    %v1310 = vand.u32 %v1309, 127
    %vm1311 = vcmp.lt.s32.totalorder %v1310, 5
    %v1312 = vsel %vm1311, %v1306, -inf
    %1313 = vmax.xlane.f32.xlu0 %v1312
    %v1314 = vpop.xlane.xlu0 %1313
    %v1315 = vsub.f32 %v1312, %v1314
    %v1316 = vmul.f32 %v1315, 1.442695
    %v1317 = vpow.pop %v1316
    %1318 = vadd.xlane.f32.xlu0 %v1317
    %v1319 = vpop.xlane.xlu0 %1318
    %v1320 = vlog2.pop %v1319
    %v1321 = vmul.f32 %v1320, 0.6931472
    %v1322 = vsub.f32 %v1315, %v1321
    %1323 = vst [vmem:[#allocation14] sm:$0xff] %v1322
    // Predicated region
    $region78: #{tpu_custom_call.1} parent=1 // pred_check
      _
    $region79: #{tpu_custom_call.1} parent=1 // pred_check_branch
      %1325 = sbr.rel (0) target = $region81
    $region80: #{tpu_custom_call.1} parent=1 // pred_region
      %s1327 = ssub.s32 128, 128
      %1328 = vsyncadd [#allocation4], %s1327
      %s1330 = sshll.u32 [#allocation14], 4
      %s1331 = int_to_ptr.vmem [resolvable:$true] %s1330
      %1333 = dma.vmem_to_hbm [thread:$0]  %s1331, 128, %s12, [#allocation4]
    $region81: #{tpu_custom_call.1} parent=1 // pred_fallthru
      _
    // Predicated region
    $region82: #{tpu_custom_call.1} parent=1 // pred_check
      _
    $region83: #{tpu_custom_call.1} parent=1 // pred_check_branch
      %1335 = sbr.rel (0) target = $region85
    $region84: #{tpu_custom_call.1} parent=1 // pred_region
      %1336 = dma.done [#allocation4], 128
    $region85: #{tpu_custom_call.1} parent=1 // pred_fallthru
      _
    %1337 = vsyncpa [#allocation3], 1
    %1338 = vsyncpa [#allocation6], 1
    %1339 = vsyncpa [#allocation9], 1
    %1340 = vsyncpa [#allocation12], 1
    %1341 = vsyncpa [#allocation4], 1

</llo_original>
